<compile_context>
chip_gen: v7x
topology: tpu7x:2x2x1
jax: 0.10.0
libtpu: 0.0.40
codegen_flags: <defaults>
</compile_context>

<pallas_src>
import jax
import jax.numpy as jnp
from jax import lax
from jax.experimental import pallas as pl
from jax.experimental.pallas import tpu as pltpu


def bottleneck_kernel(x_ref, w1_ref, b1_ref, w2_ref, b2_ref, w3_ref, b3_ref,
                      fc1w_ref, fc1b_ref, fc2w_ref, fc2b_ref,
                      out_ref, xout_ref):
    Bb, H, W, Cin = x_ref.shape
    P = w1_ref.shape[1]            # planes
    C4 = w3_ref.shape[1]           # planes * 4 (== Cin here)
    M = Bb * H * W

    x = x_ref[...]                                 # [Bb, H, W, Cin] f32
    xm = x.reshape(M, Cin)                         # flattened (leading dims only)

    # ---- conv1 (1x1) + bn1 (scale pre-folded into w1) + relu -> one matmul --
    h1 = jnp.dot(xm.astype(jnp.bfloat16), w1_ref[...],
                 preferred_element_type=jnp.float32)
    h1 = jnp.maximum(h1 + b1_ref[...], 0.0)        # [M, P]

    # ---- conv2 (3x3, pad=1, stride=1) + bn2 + relu --------------------------
    # Build a zero-padded *value* (registers, no VMEM scratch), slice the nine
    # shifted taps, concatenate along K and do a single [M, 9P] x [9P, P] dot.
    h1b = h1.reshape(Bb, H, W, P)
    zrow = jnp.zeros((Bb, 1, W, P), jnp.float32)
    hp = jnp.concatenate([zrow, h1b, zrow], axis=1)            # [Bb, H+2, W, P]
    zcol = jnp.zeros((Bb, H + 2, 1, P), jnp.float32)
    hp = jnp.concatenate([zcol, hp, zcol], axis=2)             # [Bb, H+2, W+2, P]
    taps = [hp[:, di:di + H, dj:dj + W, :].reshape(M, P)
            for di in range(3) for dj in range(3)]
    patches = jnp.concatenate(taps, axis=-1).astype(jnp.bfloat16)   # [M, 9P]
    h2 = jnp.dot(patches, w2_ref[...], preferred_element_type=jnp.float32)
    h2 = jnp.maximum(h2 + b2_ref[...], 0.0)        # [M, P]

    # ---- conv3 (1x1) + bn3 (no relu) -> original_out ------------------------
    h3 = jnp.dot(h2.astype(jnp.bfloat16), w3_ref[...],
                 preferred_element_type=jnp.float32) + b3_ref[...]   # [M, C4]
    h3b = h3.reshape(Bb, H * W, C4)

    # ---- SE branch: per-image global avg pool -> fc1 -> relu -> fc2 -> sigmoid
    # hidden is tiny (planes/4) so do the FCs on the VPU/XLU (bcast-mul + sum).
    pooled = jnp.mean(h3b, axis=1)                                      # [Bb, C4]
    z = jnp.sum(pooled[:, None, :] * fc1w_ref[...][None, :, :], axis=2)  # [Bb, hid]
    z = jnp.maximum(z + fc1b_ref[...], 0.0)
    g = jnp.sum(z[:, :, None] * fc2w_ref[...][None, :, :], axis=1) + fc2b_ref[...]
    gate = jax.nn.sigmoid(g)                                            # [Bb, C4]

    # ---- scale, residual add, final relu (lane-dense stores: C4 = 128) ------
    out = h3b * gate[:, None, :] + x.reshape(Bb, H * W, C4)             # [Bb, HW, C4]
    out_ref[...] = out.reshape(Bb, H, W, C4)
    xout_ref[...] = jnp.maximum(out, 0.0).reshape(Bb, H, W, C4)


def bottleneck_pallas(x, params, block_batch=None):
    """x: [B, H, W, Cin] NHWC, Cin == planes*4. Returns (residual, out, x_out)."""
    B, H, W, Cin = x.shape
    (w1, s1, b1, w2, s2, b2, w3, s3, b3, fc1w, fc1b, fc2w, fc2b) = params
    P = w1.shape[1]
    C4 = w3.shape[1]
    assert Cin == C4, "downsample=None path requires inplanes == planes*4"
    # TODO(synk): stride>1 / downsample branch not implemented.

    if block_batch is None:
        # Keep >= 2 grid steps so both v7x TensorCores get work; larger B packs
        # several images per step to amortize the ~0.35us/step grid overhead.
        block_batch = max(1, B // 2)
    while B % block_batch:
        block_batch -= 1
    Bb = block_batch

    # Fold BN scales into conv weights at trace time (zero runtime cost) and
    # cast matmul weights to bf16 for the MXU; biases / SE weights stay f32.
    w1f = (w1 * s1).astype(jnp.bfloat16)                        # [Cin, P]
    w2f = (w2 * s2).reshape(9 * P, P).astype(jnp.bfloat16)      # [9P, P]
    w3f = (w3 * s3).astype(jnp.bfloat16)                        # [P, C4]
    fc1wT = jnp.transpose(fc1w)                                 # [hidden, C4]

    full = lambda a: pl.BlockSpec(a.shape, lambda b: (0,) * a.ndim)

    out, x_out = pl.pallas_call(
        bottleneck_kernel,
        out_shape=(jax.ShapeDtypeStruct((B, H, W, C4), jnp.float32),
                   jax.ShapeDtypeStruct((B, H, W, C4), jnp.float32)),
        grid=(B // Bb,),
        in_specs=[
            pl.BlockSpec((Bb, H, W, Cin), lambda b: (b, 0, 0, 0)),
            full(w1f), full(b1),
            full(w2f), full(b2),
            full(w3f), full(b3),
            full(fc1wT), full(fc1b), full(fc2w), full(fc2b),
        ],
        out_specs=[
            pl.BlockSpec((Bb, H, W, C4), lambda b: (b, 0, 0, 0)),
            pl.BlockSpec((Bb, H, W, C4), lambda b: (b, 0, 0, 0)),
        ],
        compiler_params=pltpu.CompilerParams(
            dimension_semantics=("parallel",)),
    )(x, w1f, b1, w2f, b2, w3f, b3, fc1wT, fc1b, fc2w, fc2b)

    residual = x  # downsample is None
    return residual, out, x_out


def bottleneck_reference(x, params):
    """Pure-JAX f32 reference (unfolded BN) for validation."""
    (w1, s1, b1, w2, s2, b2, w3, s3, b3, fc1w, fc1b, fc2w, fc2b) = params
    h1 = jnp.einsum('bhwc,cp->bhwp', x, w1)
    h1 = jnp.maximum(h1 * s1[0] + b1[0], 0.0)
    h2 = lax.conv_general_dilated(h1, w2, (1, 1), 'SAME',
                                  dimension_numbers=('NHWC', 'HWIO', 'NHWC'))
    h2 = jnp.maximum(h2 * s2[0] + b2[0], 0.0)
    h3 = jnp.einsum('bhwp,pq->bhwq', h2, w3)
    h3 = h3 * s3[0] + b3[0]
    pooled = jnp.mean(h3, axis=(1, 2))                       # [B, 4P]
    z = jnp.maximum(pooled @ fc1w + fc1b[0], 0.0)
    gate = jax.nn.sigmoid(z @ fc2w + fc2b[0])                # [B, 4P]
    out = h3 * gate[:, None, None, :] + x
    return x, out, jnp.maximum(out, 0.0)


def make_params(key, inplanes, planes):
    C4 = planes * 4
    hidden = round(planes / 4)
    ks = jax.random.split(key, 16)
    eps = 1e-5

    def bn(kg, kb, km, kv, c):
        gamma = 1.0 + 0.1 * jax.random.normal(kg, (c,), jnp.float32)
        beta = 0.1 * jax.random.normal(kb, (c,), jnp.float32)
        mean = 0.1 * jax.random.normal(km, (c,), jnp.float32)
        var = 0.5 + jax.random.uniform(kv, (c,), jnp.float32)
        scale = gamma / jnp.sqrt(var + eps)
        bias = beta - mean * scale
        return scale.reshape(1, c), bias.reshape(1, c)

    w1 = 0.05 * jax.random.normal(ks[0], (inplanes, planes), jnp.float32)
    s1, b1 = bn(ks[1], ks[2], ks[3], ks[4], planes)
    w2 = 0.05 * jax.random.normal(ks[5], (3, 3, planes, planes), jnp.float32)
    s2, b2 = bn(ks[6], ks[7], ks[8], ks[9], planes)
    w3 = 0.05 * jax.random.normal(ks[10], (planes, C4), jnp.float32)
    s3, b3 = bn(ks[11], ks[12], ks[13], ks[14], C4)
    kfc = jax.random.split(ks[15], 4)
    fc1w = 0.1 * jax.random.normal(kfc[0], (C4, hidden), jnp.float32)
    fc1b = 0.1 * jax.random.normal(kfc[1], (1, hidden), jnp.float32)
    fc2w = 0.1 * jax.random.normal(kfc[2], (hidden, C4), jnp.float32)
    fc2b = 0.1 * jax.random.normal(kfc[3], (1, C4), jnp.float32)
    return (w1, s1, b1, w2, s2, b2, w3, s3, b3, fc1w, fc1b, fc2w, fc2b)


if __name__ == "__main__":
    B, H, W = 2, 16, 16
    planes = 32
    inplanes = planes * 4            # 128 -> residual add works with downsample=None

    key = jax.random.PRNGKey(0)
    kx, kp = jax.random.split(key)
    x = jax.random.normal(kx, (B, H, W, inplanes), jnp.float32)   # NHWC
    params = make_params(kp, inplanes, planes)

    fwd = jax.jit(bottleneck_pallas)
    residual, out, x_out = fwd(x, params)
    jax.block_until_ready((residual, out, x_out))

    r_ref, o_ref, xo_ref = bottleneck_reference(x, params)
    # bf16 matmul operands (f32 accumulate) -> modest tolerance vs f32 reference
    assert jnp.allclose(out, o_ref, atol=2e-2, rtol=2e-2), \
        float(jnp.max(jnp.abs(out - o_ref)))
    assert jnp.allclose(x_out, xo_ref, atol=2e-2, rtol=2e-2)
    assert jnp.allclose(residual, r_ref)

    print("KERNEL_OK")
</pallas_src>

<mosaic_0001>
module attributes {stable_mosaic.version = 11 : i64} {
  func.func @bottleneck_kernel(%arg0: i32, %arg1: memref<1x16x16x128xf32, #tpu.memory_space<vmem>>, %arg2: memref<128x32xbf16, #tpu.memory_space<vmem>>, %arg3: memref<1x32xf32, #tpu.memory_space<vmem>>, %arg4: memref<288x32xbf16, #tpu.memory_space<vmem>>, %arg5: memref<1x32xf32, #tpu.memory_space<vmem>>, %arg6: memref<32x128xbf16, #tpu.memory_space<vmem>>, %arg7: memref<1x128xf32, #tpu.memory_space<vmem>>, %arg8: memref<8x128xf32, #tpu.memory_space<vmem>>, %arg9: memref<1x8xf32, #tpu.memory_space<vmem>>, %arg10: memref<8x128xf32, #tpu.memory_space<vmem>>, %arg11: memref<1x128xf32, #tpu.memory_space<vmem>>, %arg12: memref<1x16x16x128xf32, #tpu.memory_space<vmem>>, %arg13: memref<1x16x16x128xf32, #tpu.memory_space<vmem>>) attributes {dimension_semantics = [#tpu.dimension_semantics<parallel>], iteration_bounds = array<i64: 2>, scalar_prefetch = 0 : i64, scratch_operands = 0 : i64, tpu.core_type = #tpu.core_type<tc>, window_params = [{transform_indices = @transform_0, window_bounds = array<i64: 1, 16, 16, 128>}, {pipeline_mode = #tpu.pipeline_mode<synchronous>, transform_indices = @transform_1, window_bounds = array<i64: 128, 32>}, {pipeline_mode = #tpu.pipeline_mode<synchronous>, transform_indices = @transform_2, window_bounds = array<i64: 1, 32>}, {pipeline_mode = #tpu.pipeline_mode<synchronous>, transform_indices = @transform_3, window_bounds = array<i64: 288, 32>}, {pipeline_mode = #tpu.pipeline_mode<synchronous>, transform_indices = @transform_4, window_bounds = array<i64: 1, 32>}, {pipeline_mode = #tpu.pipeline_mode<synchronous>, transform_indices = @transform_5, window_bounds = array<i64: 32, 128>}, {pipeline_mode = #tpu.pipeline_mode<synchronous>, transform_indices = @transform_6, window_bounds = array<i64: 1, 128>}, {pipeline_mode = #tpu.pipeline_mode<synchronous>, transform_indices = @transform_7, window_bounds = array<i64: 8, 128>}, {pipeline_mode = #tpu.pipeline_mode<synchronous>, transform_indices = @transform_8, window_bounds = array<i64: 1, 8>}, {pipeline_mode = #tpu.pipeline_mode<synchronous>, transform_indices = @transform_9, window_bounds = array<i64: 8, 128>}, {pipeline_mode = #tpu.pipeline_mode<synchronous>, transform_indices = @transform_10, window_bounds = array<i64: 1, 128>}, {transform_indices = @transform_11, window_bounds = array<i64: 1, 16, 16, 128>}, {transform_indices = @transform_12, window_bounds = array<i64: 1, 16, 16, 128>}]} {
    %c0 = arith.constant 0 : index
    %c0_0 = arith.constant 0 : index
    %c0_1 = arith.constant 0 : index
    %c0_2 = arith.constant 0 : index
    %0 = vector.load %arg1[%c0, %c0_0, %c0_1, %c0_2] : memref<1x16x16x128xf32, #tpu.memory_space<vmem>>, vector<1x16x16x128xf32>
    %1 = vector.shape_cast %0 : vector<1x16x16x128xf32> to vector<256x128xf32>
    %2 = arith.truncf %1 : vector<256x128xf32> to vector<256x128xbf16>
    %c0_3 = arith.constant 0 : index
    %c0_4 = arith.constant 0 : index
    %3 = vector.load %arg2[%c0_3, %c0_4] : memref<128x32xbf16, #tpu.memory_space<vmem>>, vector<128x32xbf16>
    %cst = arith.constant dense<0.000000e+00> : vector<256x32xf32>
    %4 = tpu.matmul %2, %3, %cst {dimension_numbers = #tpu.dot_dimension_numbers<[1], [0], [0], [1], [0, 0, 1, 1], [], []>} : vector<256x128xbf16>, vector<128x32xbf16>, vector<256x32xf32> -> vector<256x32xf32>
    %c0_5 = arith.constant 0 : index
    %c0_6 = arith.constant 0 : index
    %5 = vector.load %arg3[%c0_5, %c0_6] : memref<1x32xf32, #tpu.memory_space<vmem>>, vector<1x32xf32>
    %6 = vector.broadcast %5 : vector<1x32xf32> to vector<256x32xf32>
    %7 = arith.addf %4, %6 : vector<256x32xf32>
    %cst_7 = arith.constant 0.000000e+00 : f32
    %8 = vector.broadcast %cst_7 : f32 to vector<256x32xf32>
    %9 = arith.maximumf %7, %8 : vector<256x32xf32>
    %10 = vector.shape_cast %9 : vector<256x32xf32> to vector<1x16x16x32xf32>
    %cst_8 = arith.constant 0.000000e+00 : f32
    %11 = vector.broadcast %cst_8 : f32 to vector<1x1x16x32xf32>
    %12 = tpu.concatenate %11, %10, %11 in 1 : vector<1x1x16x32xf32>, vector<1x16x16x32xf32>, vector<1x1x16x32xf32> -> vector<1x18x16x32xf32>
    %cst_9 = arith.constant 0.000000e+00 : f32
    %13 = vector.broadcast %cst_9 : f32 to vector<1x18x1x32xf32>
    %14 = tpu.concatenate %13, %12, %13 in 2 : vector<1x18x1x32xf32>, vector<1x18x16x32xf32>, vector<1x18x1x32xf32> -> vector<1x18x18x32xf32>
    %15 = vector.extract_strided_slice %14 {offsets = [0, 0, 0, 0], sizes = [1, 16, 16, 32], strides = [1, 1, 1, 1]} : vector<1x18x18x32xf32> to vector<1x16x16x32xf32>
    %16 = vector.shape_cast %15 : vector<1x16x16x32xf32> to vector<256x32xf32>
    %17 = vector.extract_strided_slice %14 {offsets = [0, 0, 1, 0], sizes = [1, 16, 16, 32], strides = [1, 1, 1, 1]} : vector<1x18x18x32xf32> to vector<1x16x16x32xf32>
    %18 = vector.shape_cast %17 : vector<1x16x16x32xf32> to vector<256x32xf32>
    %19 = vector.extract_strided_slice %14 {offsets = [0, 0, 2, 0], sizes = [1, 16, 16, 32], strides = [1, 1, 1, 1]} : vector<1x18x18x32xf32> to vector<1x16x16x32xf32>
    %20 = vector.shape_cast %19 : vector<1x16x16x32xf32> to vector<256x32xf32>
    %21 = vector.extract_strided_slice %14 {offsets = [0, 1, 0, 0], sizes = [1, 16, 16, 32], strides = [1, 1, 1, 1]} : vector<1x18x18x32xf32> to vector<1x16x16x32xf32>
    %22 = vector.shape_cast %21 : vector<1x16x16x32xf32> to vector<256x32xf32>
    %23 = vector.extract_strided_slice %14 {offsets = [0, 1, 1, 0], sizes = [1, 16, 16, 32], strides = [1, 1, 1, 1]} : vector<1x18x18x32xf32> to vector<1x16x16x32xf32>
    %24 = vector.shape_cast %23 : vector<1x16x16x32xf32> to vector<256x32xf32>
    %25 = vector.extract_strided_slice %14 {offsets = [0, 1, 2, 0], sizes = [1, 16, 16, 32], strides = [1, 1, 1, 1]} : vector<1x18x18x32xf32> to vector<1x16x16x32xf32>
    %26 = vector.shape_cast %25 : vector<1x16x16x32xf32> to vector<256x32xf32>
    %27 = vector.extract_strided_slice %14 {offsets = [0, 2, 0, 0], sizes = [1, 16, 16, 32], strides = [1, 1, 1, 1]} : vector<1x18x18x32xf32> to vector<1x16x16x32xf32>
    %28 = vector.shape_cast %27 : vector<1x16x16x32xf32> to vector<256x32xf32>
    %29 = vector.extract_strided_slice %14 {offsets = [0, 2, 1, 0], sizes = [1, 16, 16, 32], strides = [1, 1, 1, 1]} : vector<1x18x18x32xf32> to vector<1x16x16x32xf32>
    %30 = vector.shape_cast %29 : vector<1x16x16x32xf32> to vector<256x32xf32>
    %31 = vector.extract_strided_slice %14 {offsets = [0, 2, 2, 0], sizes = [1, 16, 16, 32], strides = [1, 1, 1, 1]} : vector<1x18x18x32xf32> to vector<1x16x16x32xf32>
    %32 = vector.shape_cast %31 : vector<1x16x16x32xf32> to vector<256x32xf32>
    %33 = tpu.concatenate %16, %18, %20, %22, %24, %26, %28, %30, %32 in 1 : vector<256x32xf32>, vector<256x32xf32>, vector<256x32xf32>, vector<256x32xf32>, vector<256x32xf32>, vector<256x32xf32>, vector<256x32xf32>, vector<256x32xf32>, vector<256x32xf32> -> vector<256x288xf32>
    %34 = arith.truncf %33 : vector<256x288xf32> to vector<256x288xbf16>
    %c0_10 = arith.constant 0 : index
    %c0_11 = arith.constant 0 : index
    %35 = vector.load %arg4[%c0_10, %c0_11] : memref<288x32xbf16, #tpu.memory_space<vmem>>, vector<288x32xbf16>
    %cst_12 = arith.constant dense<0.000000e+00> : vector<256x32xf32>
    %36 = tpu.matmul %34, %35, %cst_12 {dimension_numbers = #tpu.dot_dimension_numbers<[1], [0], [0], [1], [0, 0, 1, 1], [], []>} : vector<256x288xbf16>, vector<288x32xbf16>, vector<256x32xf32> -> vector<256x32xf32>
    %c0_13 = arith.constant 0 : index
    %c0_14 = arith.constant 0 : index
    %37 = vector.load %arg5[%c0_13, %c0_14] : memref<1x32xf32, #tpu.memory_space<vmem>>, vector<1x32xf32>
    %38 = vector.broadcast %37 : vector<1x32xf32> to vector<256x32xf32>
    %39 = arith.addf %36, %38 : vector<256x32xf32>
    %cst_15 = arith.constant 0.000000e+00 : f32
    %40 = vector.broadcast %cst_15 : f32 to vector<256x32xf32>
    %41 = arith.maximumf %39, %40 : vector<256x32xf32>
    %42 = arith.truncf %41 : vector<256x32xf32> to vector<256x32xbf16>
    %c0_16 = arith.constant 0 : index
    %c0_17 = arith.constant 0 : index
    %43 = vector.load %arg6[%c0_16, %c0_17] : memref<32x128xbf16, #tpu.memory_space<vmem>>, vector<32x128xbf16>
    %cst_18 = arith.constant dense<0.000000e+00> : vector<256x128xf32>
    %44 = tpu.matmul %42, %43, %cst_18 {dimension_numbers = #tpu.dot_dimension_numbers<[1], [0], [0], [1], [0, 0, 1, 1], [], []>} : vector<256x32xbf16>, vector<32x128xbf16>, vector<256x128xf32> -> vector<256x128xf32>
    %c0_19 = arith.constant 0 : index
    %c0_20 = arith.constant 0 : index
    %45 = vector.load %arg7[%c0_19, %c0_20] : memref<1x128xf32, #tpu.memory_space<vmem>>, vector<1x128xf32>
    %46 = vector.broadcast %45 : vector<1x128xf32> to vector<256x128xf32>
    %47 = arith.addf %44, %46 : vector<256x128xf32>
    %48 = vector.shape_cast %47 : vector<256x128xf32> to vector<1x256x128xf32>
    %cst_21 = arith.constant dense<0.000000e+00> : vector<1x128xf32>
    %49 = vector.multi_reduction <add>, %48, %cst_21 [1] : vector<1x256x128xf32> to vector<1x128xf32>
    %cst_22 = arith.constant 2.560000e+02 : f32
    %50 = vector.broadcast %cst_22 : f32 to vector<1x128xf32>
    %51 = arith.divf %49, %50 : vector<1x128xf32>
    %52 = vector.shape_cast %51 : vector<1x128xf32> to vector<1x1x128xf32>
    %c0_23 = arith.constant 0 : index
    %c0_24 = arith.constant 0 : index
    %53 = vector.load %arg8[%c0_23, %c0_24] : memref<8x128xf32, #tpu.memory_space<vmem>>, vector<8x128xf32>
    %54 = vector.shape_cast %53 : vector<8x128xf32> to vector<1x8x128xf32>
    %55 = vector.broadcast %52 : vector<1x1x128xf32> to vector<1x8x128xf32>
    %56 = arith.mulf %55, %54 : vector<1x8x128xf32>
    %cst_25 = arith.constant dense<0.000000e+00> : vector<1x8xf32>
    %57 = vector.multi_reduction <add>, %56, %cst_25 [2] : vector<1x8x128xf32> to vector<1x8xf32>
    %c0_26 = arith.constant 0 : index
    %c0_27 = arith.constant 0 : index
    %58 = vector.load %arg9[%c0_26, %c0_27] : memref<1x8xf32, #tpu.memory_space<vmem>>, vector<1x8xf32>
    %59 = arith.addf %57, %58 : vector<1x8xf32>
    %cst_28 = arith.constant 0.000000e+00 : f32
    %60 = vector.broadcast %cst_28 : f32 to vector<1x8xf32>
    %61 = arith.maximumf %59, %60 : vector<1x8xf32>
    %62 = vector.shape_cast %61 : vector<1x8xf32> to vector<1x8x1xf32>
    %c0_29 = arith.constant 0 : index
    %c0_30 = arith.constant 0 : index
    %63 = vector.load %arg10[%c0_29, %c0_30] : memref<8x128xf32, #tpu.memory_space<vmem>>, vector<8x128xf32>
    %64 = vector.shape_cast %63 : vector<8x128xf32> to vector<1x8x128xf32>
    %65 = vector.broadcast %62 : vector<1x8x1xf32> to vector<1x8x128xf32>
    %66 = arith.mulf %65, %64 : vector<1x8x128xf32>
    %cst_31 = arith.constant dense<0.000000e+00> : vector<1x128xf32>
    %67 = vector.multi_reduction <add>, %66, %cst_31 [1] : vector<1x8x128xf32> to vector<1x128xf32>
    %c0_32 = arith.constant 0 : index
    %c0_33 = arith.constant 0 : index
    %68 = vector.load %arg11[%c0_32, %c0_33] : memref<1x128xf32, #tpu.memory_space<vmem>>, vector<1x128xf32>
    %69 = arith.addf %67, %68 : vector<1x128xf32>
    %70 = arith.negf %69 : vector<1x128xf32>
    %71 = math.exp %70 : vector<1x128xf32>
    %cst_34 = arith.constant 1.000000e+00 : f32
    %72 = vector.broadcast %cst_34 : f32 to vector<1x128xf32>
    %73 = arith.addf %72, %71 : vector<1x128xf32>
    %74 = arith.divf %72, %73 : vector<1x128xf32>
    %75 = vector.shape_cast %74 : vector<1x128xf32> to vector<1x1x128xf32>
    %76 = vector.broadcast %75 : vector<1x1x128xf32> to vector<1x256x128xf32>
    %77 = arith.mulf %48, %76 : vector<1x256x128xf32>
    %78 = vector.shape_cast %0 : vector<1x16x16x128xf32> to vector<1x256x128xf32>
    %79 = arith.addf %77, %78 : vector<1x256x128xf32>
    %80 = vector.shape_cast %79 : vector<1x256x128xf32> to vector<1x16x16x128xf32>
    %c0_35 = arith.constant 0 : index
    %c0_36 = arith.constant 0 : index
    %c0_37 = arith.constant 0 : index
    %c0_38 = arith.constant 0 : index
    %81 = vector.load %arg12[%c0_35, %c0_36, %c0_37, %c0_38] : memref<1x16x16x128xf32, #tpu.memory_space<vmem>>, vector<1x16x16x128xf32>
    tpu.vector_store %arg12[%c0_35, %c0_36, %c0_37, %c0_38], %80 {strides = array<i32>} : memref<1x16x16x128xf32, #tpu.memory_space<vmem>>, vector<1x16x16x128xf32>,
    %cst_39 = arith.constant 0.000000e+00 : f32
    %82 = vector.broadcast %cst_39 : f32 to vector<1x256x128xf32>
    %83 = arith.maximumf %79, %82 : vector<1x256x128xf32>
    %84 = vector.shape_cast %83 : vector<1x256x128xf32> to vector<1x16x16x128xf32>
    %c0_40 = arith.constant 0 : index
    %c0_41 = arith.constant 0 : index
    %c0_42 = arith.constant 0 : index
    %c0_43 = arith.constant 0 : index
    %85 = vector.load %arg13[%c0_40, %c0_41, %c0_42, %c0_43] : memref<1x16x16x128xf32, #tpu.memory_space<vmem>>, vector<1x16x16x128xf32>
    tpu.vector_store %arg13[%c0_40, %c0_41, %c0_42, %c0_43], %84 {strides = array<i32>} : memref<1x16x16x128xf32, #tpu.memory_space<vmem>>, vector<1x16x16x128xf32>,
    return
  }
  func.func @transform_0(%arg0: i32) -> (i32, i32, i32, i32) {
    %c0_i32 = arith.constant 0 : i32
    %c0_i32_0 = arith.constant 0 : i32
    %c0_i32_1 = arith.constant 0 : i32
    %c0_i32_2 = arith.constant 0 : i32
    return %arg0, %c0_i32, %c0_i32_0, %c0_i32_1 : i32, i32, i32, i32
  }
  func.func @transform_1(%arg0: i32) -> (i32, i32) {
    %c0_i32 = arith.constant 0 : i32
    %c0_i32_0 = arith.constant 0 : i32
    %c0_i32_1 = arith.constant 0 : i32
    return %c0_i32, %c0_i32_0 : i32, i32
  }
  func.func @transform_2(%arg0: i32) -> (i32, i32) {
    %c0_i32 = arith.constant 0 : i32
    %c0_i32_0 = arith.constant 0 : i32
    %c0_i32_1 = arith.constant 0 : i32
    return %c0_i32, %c0_i32_0 : i32, i32
  }
  func.func @transform_3(%arg0: i32) -> (i32, i32) {
    %c0_i32 = arith.constant 0 : i32
    %c0_i32_0 = arith.constant 0 : i32
    %c0_i32_1 = arith.constant 0 : i32
    return %c0_i32, %c0_i32_0 : i32, i32
  }
  func.func @transform_4(%arg0: i32) -> (i32, i32) {
    %c0_i32 = arith.constant 0 : i32
    %c0_i32_0 = arith.constant 0 : i32
    %c0_i32_1 = arith.constant 0 : i32
    return %c0_i32, %c0_i32_0 : i32, i32
  }
  func.func @transform_5(%arg0: i32) -> (i32, i32) {
    %c0_i32 = arith.constant 0 : i32
    %c0_i32_0 = arith.constant 0 : i32
    %c0_i32_1 = arith.constant 0 : i32
    return %c0_i32, %c0_i32_0 : i32, i32
  }
  func.func @transform_6(%arg0: i32) -> (i32, i32) {
    %c0_i32 = arith.constant 0 : i32
    %c0_i32_0 = arith.constant 0 : i32
    %c0_i32_1 = arith.constant 0 : i32
    return %c0_i32, %c0_i32_0 : i32, i32
  }
  func.func @transform_7(%arg0: i32) -> (i32, i32) {
    %c0_i32 = arith.constant 0 : i32
    %c0_i32_0 = arith.constant 0 : i32
    %c0_i32_1 = arith.constant 0 : i32
    return %c0_i32, %c0_i32_0 : i32, i32
  }
  func.func @transform_8(%arg0: i32) -> (i32, i32) {
    %c0_i32 = arith.constant 0 : i32
    %c0_i32_0 = arith.constant 0 : i32
    %c0_i32_1 = arith.constant 0 : i32
    return %c0_i32, %c0_i32_0 : i32, i32
  }
  func.func @transform_9(%arg0: i32) -> (i32, i32) {
    %c0_i32 = arith.constant 0 : i32
    %c0_i32_0 = arith.constant 0 : i32
    %c0_i32_1 = arith.constant 0 : i32
    return %c0_i32, %c0_i32_0 : i32, i32
  }
  func.func @transform_10(%arg0: i32) -> (i32, i32) {
    %c0_i32 = arith.constant 0 : i32
    %c0_i32_0 = arith.constant 0 : i32
    %c0_i32_1 = arith.constant 0 : i32
    return %c0_i32, %c0_i32_0 : i32, i32
  }
  func.func @transform_11(%arg0: i32) -> (i32, i32, i32, i32) {
    %c0_i32 = arith.constant 0 : i32
    %c0_i32_0 = arith.constant 0 : i32
    %c0_i32_1 = arith.constant 0 : i32
    %c0_i32_2 = arith.constant 0 : i32
    return %arg0, %c0_i32, %c0_i32_0, %c0_i32_1 : i32, i32, i32, i32
  }
  func.func @transform_12(%arg0: i32) -> (i32, i32, i32, i32) {
    %c0_i32 = arith.constant 0 : i32
    %c0_i32_0 = arith.constant 0 : i32
    %c0_i32_1 = arith.constant 0 : i32
    %c0_i32_2 = arith.constant 0 : i32
    return %arg0, %c0_i32, %c0_i32_0, %c0_i32_1 : i32, i32, i32, i32
  }
}

</mosaic_0001>

<llo_original>
// kernel: bottleneck_pallas.1
$region0: #{bottleneck_pallas.1}
  #allocation0 [shape = 'u32[]', space=smem, size = 0x4, offset = 0x4, fixed_abs, tag = 'smem constant byte address 0x4 - core index']
  #allocation1 [shape = 'u32[144,128]{1,0:T(1,128)}', space=vmem, size = 0x12000, scoped, tag = 'internal scratch']
  %s0 = inlined_call_operand.vmem [shape: f32[2,16,16,128], index: 0, kind: input, shape index: {}]
  %s1 = inlined_call_operand.vmem [shape: bf16[128,32], index: 1, kind: input, shape index: {}]
  %s2 = inlined_call_operand.vmem [shape: f32[1,32], index: 2, kind: input, shape index: {}]
  %s3 = inlined_call_operand.vmem [shape: bf16[288,32], index: 3, kind: input, shape index: {}]
  %s4 = inlined_call_operand.vmem [shape: f32[1,32], index: 4, kind: input, shape index: {}]
  %s5 = inlined_call_operand.vmem [shape: bf16[32,128], index: 5, kind: input, shape index: {}]
  %s6 = inlined_call_operand.vmem [shape: f32[1,128], index: 6, kind: input, shape index: {}]
  %s7 = inlined_call_operand.vmem [shape: f32[8,128], index: 7, kind: input, shape index: {}]
  %s8 = inlined_call_operand.vmem [shape: f32[1,8], index: 8, kind: input, shape index: {}]
  %s9 = inlined_call_operand.vmem [shape: f32[8,128], index: 9, kind: input, shape index: {}]
  %s10 = inlined_call_operand.vmem [shape: f32[1,128], index: 10, kind: input, shape index: {}]
  %s11 = inlined_call_operand.hbm [shape: f32[2,16,16,128], index: 11, kind: output, shape index: {0}]
  %s12 = inlined_call_operand.hbm [shape: f32[2,16,16,128], index: 12, kind: output, shape index: {1}]
  %13 = xla_tuple %s11, %s12
  %s14 = sld [smem:[#allocation0]]
  $region85: #{bottleneck_pallas.1} parent=0
    _
  %s16 = ssub.s32 1, %s14
  %s17 = scalar_select 0, %s16, %s14
  $region1: #{bottleneck_pallas.1} parent=0
    #allocation2 [shape = 'u8[262144]{0}', space=vmem, size = 0x40000, scoped, tag = 'output window, operand 0']
    #allocation3 [shape = 's32[2]{0}', space=sflag, size = 0x8, scoped, tag = 'scoped memory for bottleneck_pallas.1']
    #allocation4 [shape = 'u8[262144]{0}', space=vmem, size = 0x40000, scoped, tag = 'output window, operand 1']
    #allocation5 [shape = 's32[2]{0}', space=sflag, size = 0x8, scoped, tag = 'scoped memory for bottleneck_pallas.1']
    %18 = vsyncpa [#allocation3], 0
    %s19 = scalar_lea.sflag [#allocation3], 1
    %20 = vsyncpa %s19, 0
    %21 = vsyncpa [#allocation5], 0
    %s22 = scalar_lea.sflag [#allocation5], 1
    %23 = vsyncpa %s22, 0
    loop: start=0, step=1, limit=4
    $region2: #{bottleneck_pallas.1} parent=1 // loop_pre_header
      _
    $region3: #{bottleneck_pallas.1} parent=1 // loop_header
      %s25 = sphi 0, %s29
      %p26 = scmp.ge.s32.totalorder %s25, 4
      %s35 = sphi 0, %s37
      %s38 = sphi 0, %s35
      %s39 = sphi 0, %s38
      %s55 = sphi 0, %s39
      %s59 = sphi 0, %s59
      %s61 = sphi 0, %s59
      %s62 = sphi 0, %s61
      %s76 = sphi 0, %s62
      %s80 = sphi 0, %s80
      %s82 = sphi 0, %s80
      %s83 = sphi 0, %s82
      %s97 = sphi 0, %s83
      %s101 = sphi 0, %s101
      %s103 = sphi 0, %s101
      %s104 = sphi 0, %s103
      %s118 = sphi 0, %s104
      %s122 = sphi 0, %s122
      %s124 = sphi 0, %s122
      %s125 = sphi 0, %s124
      %s139 = sphi 0, %s125
      %s143 = sphi 0, %s143
      %s145 = sphi 0, %s143
      %s146 = sphi 0, %s145
      %s160 = sphi 0, %s146
      %s164 = sphi 0, %s164
      %s166 = sphi 0, %s164
      %s167 = sphi 0, %s166
      %s181 = sphi 0, %s167
      %s185 = sphi 0, %s185
      %s187 = sphi 0, %s185
      %s188 = sphi 0, %s187
      %s202 = sphi 0, %s188
      %s206 = sphi 0, %s206
      %s208 = sphi 0, %s206
      %s209 = sphi 0, %s208
      %s223 = sphi 0, %s209
      %s227 = sphi 0, %s227
      %s229 = sphi 0, %s227
      %s230 = sphi 0, %s229
      %s244 = sphi 0, %s230
      %s248 = sphi 0, %s248
      %s250 = sphi 0, %s248
      %s251 = sphi 0, %s250
      %s265 = sphi 0, %s251
      %s271 = sphi 0, %s273
      %s274 = sphi 0, %s271
      %s275 = sphi 0, %s274
      %s291 = sphi 0, %s275
      %s297 = sphi 0, %s299
      %s300 = sphi 0, %s297
      %s301 = sphi 0, %s300
      %s317 = sphi 0, %s301
    $region4: #{bottleneck_pallas.1} parent=1 // loop_header_branch
      %28 = sbr.rel (%p26) target = $region8
    $region5: #{bottleneck_pallas.1} parent=1 // loop_body
      %s30 = ssub.s32 %s25, 1
      %s31 = ssub.s32 %s25, 2
      %s32 = sadd.s32 %s25, 1
      %s33 = ssub.s32 %s25, %s32
      %p34 = scmp.eq.s32.totalorder %s33, 0
      %s36 = sadd.s32 %s35, 1
      %s37 = scalar_select %p34, %s35, %s36
      %p40 = pneg %p34
      %p41 = scmp.eq.s32.totalorder %s25, 1
      %p42 = por %p40, %p41
      %p43 = scmp.ne.s32.totalorder %s35, %s38
      %p44 = scmp.eq.s32.totalorder %s25, 0
      %p45 = por %p43, %p44
      %p46 = scmp.ne.s32.totalorder %s35, %s38
      %p47 = scmp.eq.s32.totalorder %s30, 1
      %p48 = por %p46, %p47
      %p49 = scmp.ne.s32.totalorder %s38, %s39
      %p50 = scmp.eq.s32.totalorder %s30, 0
      %p51 = por %p49, %p50
      %p52 = scmp.ne.s32.totalorder %s38, %s39
      %p53 = scmp.eq.s32.totalorder %s31, 1
      %p54 = por %p52, %p53
      %p56 = scmp.ne.s32.totalorder %s39, %s55
      %p57 = scmp.eq.s32.totalorder %s31, 0
      %p58 = por %p56, %p57
      %s60 = sadd.s32 %s59, 1
      %p63 = scmp.eq.s32.totalorder %s25, 1
      %p64 = scmp.ne.s32.totalorder %s59, %s61
      %p65 = scmp.eq.s32.totalorder %s25, 0
      %p66 = por %p64, %p65
      %p67 = scmp.ne.s32.totalorder %s59, %s61
      %p68 = scmp.eq.s32.totalorder %s30, 1
      %p69 = por %p67, %p68
      %p70 = scmp.ne.s32.totalorder %s61, %s62
      %p71 = scmp.eq.s32.totalorder %s30, 0
      %p72 = por %p70, %p71
      %p73 = scmp.ne.s32.totalorder %s61, %s62
      %p74 = scmp.eq.s32.totalorder %s31, 1
      %p75 = por %p73, %p74
      %p77 = scmp.ne.s32.totalorder %s62, %s76
      %p78 = scmp.eq.s32.totalorder %s31, 0
      %p79 = por %p77, %p78
      %s81 = sadd.s32 %s80, 1
      %p84 = scmp.eq.s32.totalorder %s25, 1
      %p85 = scmp.ne.s32.totalorder %s80, %s82
      %p86 = scmp.eq.s32.totalorder %s25, 0
      %p87 = por %p85, %p86
      %p88 = scmp.ne.s32.totalorder %s80, %s82
      %p89 = scmp.eq.s32.totalorder %s30, 1
      %p90 = por %p88, %p89
      %p91 = scmp.ne.s32.totalorder %s82, %s83
      %p92 = scmp.eq.s32.totalorder %s30, 0
      %p93 = por %p91, %p92
      %p94 = scmp.ne.s32.totalorder %s82, %s83
      %p95 = scmp.eq.s32.totalorder %s31, 1
      %p96 = por %p94, %p95
      %p98 = scmp.ne.s32.totalorder %s83, %s97
      %p99 = scmp.eq.s32.totalorder %s31, 0
      %p100 = por %p98, %p99
      %s102 = sadd.s32 %s101, 1
      %p105 = scmp.eq.s32.totalorder %s25, 1
      %p106 = scmp.ne.s32.totalorder %s101, %s103
      %p107 = scmp.eq.s32.totalorder %s25, 0
      %p108 = por %p106, %p107
      %p109 = scmp.ne.s32.totalorder %s101, %s103
      %p110 = scmp.eq.s32.totalorder %s30, 1
      %p111 = por %p109, %p110
      %p112 = scmp.ne.s32.totalorder %s103, %s104
      %p113 = scmp.eq.s32.totalorder %s30, 0
      %p114 = por %p112, %p113
      %p115 = scmp.ne.s32.totalorder %s103, %s104
      %p116 = scmp.eq.s32.totalorder %s31, 1
      %p117 = por %p115, %p116
      %p119 = scmp.ne.s32.totalorder %s104, %s118
      %p120 = scmp.eq.s32.totalorder %s31, 0
      %p121 = por %p119, %p120
      %s123 = sadd.s32 %s122, 1
      %p126 = scmp.eq.s32.totalorder %s25, 1
      %p127 = scmp.ne.s32.totalorder %s122, %s124
      %p128 = scmp.eq.s32.totalorder %s25, 0
      %p129 = por %p127, %p128
      %p130 = scmp.ne.s32.totalorder %s122, %s124
      %p131 = scmp.eq.s32.totalorder %s30, 1
      %p132 = por %p130, %p131
      %p133 = scmp.ne.s32.totalorder %s124, %s125
      %p134 = scmp.eq.s32.totalorder %s30, 0
      %p135 = por %p133, %p134
      %p136 = scmp.ne.s32.totalorder %s124, %s125
      %p137 = scmp.eq.s32.totalorder %s31, 1
      %p138 = por %p136, %p137
      %p140 = scmp.ne.s32.totalorder %s125, %s139
      %p141 = scmp.eq.s32.totalorder %s31, 0
      %p142 = por %p140, %p141
      %s144 = sadd.s32 %s143, 1
      %p147 = scmp.eq.s32.totalorder %s25, 1
      %p148 = scmp.ne.s32.totalorder %s143, %s145
      %p149 = scmp.eq.s32.totalorder %s25, 0
      %p150 = por %p148, %p149
      %p151 = scmp.ne.s32.totalorder %s143, %s145
      %p152 = scmp.eq.s32.totalorder %s30, 1
      %p153 = por %p151, %p152
      %p154 = scmp.ne.s32.totalorder %s145, %s146
      %p155 = scmp.eq.s32.totalorder %s30, 0
      %p156 = por %p154, %p155
      %p157 = scmp.ne.s32.totalorder %s145, %s146
      %p158 = scmp.eq.s32.totalorder %s31, 1
      %p159 = por %p157, %p158
      %p161 = scmp.ne.s32.totalorder %s146, %s160
      %p162 = scmp.eq.s32.totalorder %s31, 0
      %p163 = por %p161, %p162
      %s165 = sadd.s32 %s164, 1
      %p168 = scmp.eq.s32.totalorder %s25, 1
      %p169 = scmp.ne.s32.totalorder %s164, %s166
      %p170 = scmp.eq.s32.totalorder %s25, 0
      %p171 = por %p169, %p170
      %p172 = scmp.ne.s32.totalorder %s164, %s166
      %p173 = scmp.eq.s32.totalorder %s30, 1
      %p174 = por %p172, %p173
      %p175 = scmp.ne.s32.totalorder %s166, %s167
      %p176 = scmp.eq.s32.totalorder %s30, 0
      %p177 = por %p175, %p176
      %p178 = scmp.ne.s32.totalorder %s166, %s167
      %p179 = scmp.eq.s32.totalorder %s31, 1
      %p180 = por %p178, %p179
      %p182 = scmp.ne.s32.totalorder %s167, %s181
      %p183 = scmp.eq.s32.totalorder %s31, 0
      %p184 = por %p182, %p183
      %s186 = sadd.s32 %s185, 1
      %p189 = scmp.eq.s32.totalorder %s25, 1
      %p190 = scmp.ne.s32.totalorder %s185, %s187
      %p191 = scmp.eq.s32.totalorder %s25, 0
      %p192 = por %p190, %p191
      %p193 = scmp.ne.s32.totalorder %s185, %s187
      %p194 = scmp.eq.s32.totalorder %s30, 1
      %p195 = por %p193, %p194
      %p196 = scmp.ne.s32.totalorder %s187, %s188
      %p197 = scmp.eq.s32.totalorder %s30, 0
      %p198 = por %p196, %p197
      %p199 = scmp.ne.s32.totalorder %s187, %s188
      %p200 = scmp.eq.s32.totalorder %s31, 1
      %p201 = por %p199, %p200
      %p203 = scmp.ne.s32.totalorder %s188, %s202
      %p204 = scmp.eq.s32.totalorder %s31, 0
      %p205 = por %p203, %p204
      %s207 = sadd.s32 %s206, 1
      %p210 = scmp.eq.s32.totalorder %s25, 1
      %p211 = scmp.ne.s32.totalorder %s206, %s208
      %p212 = scmp.eq.s32.totalorder %s25, 0
      %p213 = por %p211, %p212
      %p214 = scmp.ne.s32.totalorder %s206, %s208
      %p215 = scmp.eq.s32.totalorder %s30, 1
      %p216 = por %p214, %p215
      %p217 = scmp.ne.s32.totalorder %s208, %s209
      %p218 = scmp.eq.s32.totalorder %s30, 0
      %p219 = por %p217, %p218
      %p220 = scmp.ne.s32.totalorder %s208, %s209
      %p221 = scmp.eq.s32.totalorder %s31, 1
      %p222 = por %p220, %p221
      %p224 = scmp.ne.s32.totalorder %s209, %s223
      %p225 = scmp.eq.s32.totalorder %s31, 0
      %p226 = por %p224, %p225
      %s228 = sadd.s32 %s227, 1
      %p231 = scmp.eq.s32.totalorder %s25, 1
      %p232 = scmp.ne.s32.totalorder %s227, %s229
      %p233 = scmp.eq.s32.totalorder %s25, 0
      %p234 = por %p232, %p233
      %p235 = scmp.ne.s32.totalorder %s227, %s229
      %p236 = scmp.eq.s32.totalorder %s30, 1
      %p237 = por %p235, %p236
      %p238 = scmp.ne.s32.totalorder %s229, %s230
      %p239 = scmp.eq.s32.totalorder %s30, 0
      %p240 = por %p238, %p239
      %p241 = scmp.ne.s32.totalorder %s229, %s230
      %p242 = scmp.eq.s32.totalorder %s31, 1
      %p243 = por %p241, %p242
      %p245 = scmp.ne.s32.totalorder %s230, %s244
      %p246 = scmp.eq.s32.totalorder %s31, 0
      %p247 = por %p245, %p246
      %s249 = sadd.s32 %s248, 1
      %p252 = scmp.eq.s32.totalorder %s25, 1
      %p253 = scmp.ne.s32.totalorder %s248, %s250
      %p254 = scmp.eq.s32.totalorder %s25, 0
      %p255 = por %p253, %p254
      %p256 = scmp.ne.s32.totalorder %s248, %s250
      %p257 = scmp.eq.s32.totalorder %s30, 1
      %p258 = por %p256, %p257
      %p259 = scmp.ne.s32.totalorder %s250, %s251
      %p260 = scmp.eq.s32.totalorder %s30, 0
      %p261 = por %p259, %p260
      %p262 = scmp.ne.s32.totalorder %s250, %s251
      %p263 = scmp.eq.s32.totalorder %s31, 1
      %p264 = por %p262, %p263
      %p266 = scmp.ne.s32.totalorder %s251, %s265
      %p267 = scmp.eq.s32.totalorder %s31, 0
      %p268 = por %p266, %p267
      %s269 = ssub.s32 %s25, %s32
      %p270 = scmp.eq.s32.totalorder %s269, 0
      %s272 = sadd.s32 %s271, 1
      %s273 = scalar_select %p270, %s271, %s272
      %p276 = pneg %p270
      %p277 = scmp.eq.s32.totalorder %s25, 1
      %p278 = por %p276, %p277
      %p279 = scmp.ne.s32.totalorder %s271, %s274
      %p280 = scmp.eq.s32.totalorder %s25, 0
      %p281 = por %p279, %p280
      %p282 = scmp.ne.s32.totalorder %s271, %s274
      %p283 = scmp.eq.s32.totalorder %s30, 1
      %p284 = por %p282, %p283
      %p285 = scmp.ne.s32.totalorder %s274, %s275
      %p286 = scmp.eq.s32.totalorder %s30, 0
      %p287 = por %p285, %p286
      %p288 = scmp.ne.s32.totalorder %s274, %s275
      %p289 = scmp.eq.s32.totalorder %s31, 1
      %p290 = por %p288, %p289
      %p292 = scmp.ne.s32.totalorder %s275, %s291
      %p293 = scmp.eq.s32.totalorder %s31, 0
      %p294 = por %p292, %p293
      %s295 = ssub.s32 %s25, %s32
      %p296 = scmp.eq.s32.totalorder %s295, 0
      %s298 = sadd.s32 %s297, 1
      %s299 = scalar_select %p296, %s297, %s298
      %p302 = pneg %p296
      %p303 = scmp.eq.s32.totalorder %s25, 1
      %p304 = por %p302, %p303
      %p305 = scmp.ne.s32.totalorder %s297, %s300
      %p306 = scmp.eq.s32.totalorder %s25, 0
      %p307 = por %p305, %p306
      %p308 = scmp.ne.s32.totalorder %s297, %s300
      %p309 = scmp.eq.s32.totalorder %s30, 1
      %p310 = por %p308, %p309
      %p311 = scmp.ne.s32.totalorder %s300, %s301
      %p312 = scmp.eq.s32.totalorder %s30, 0
      %p313 = por %p311, %p312
      %p314 = scmp.ne.s32.totalorder %s300, %s301
      %p315 = scmp.eq.s32.totalorder %s31, 1
      %p316 = por %p314, %p315
      %p318 = scmp.ne.s32.totalorder %s301, %s317
      %p319 = scmp.eq.s32.totalorder %s31, 0
      %p320 = por %p318, %p319
      %p321 = scmp.le.s32.totalorder 1, %s25
      %p322 = scmp.lt.s32.totalorder %s25, 3
      %p323 = pnand %p321, %p322
      %p324 = pneg %p323
      // Predicated region
      $region9: #{bottleneck_pallas.1} parent=5 // pred_check
        _
      $region10: #{bottleneck_pallas.1} parent=5 // pred_check_branch
        %326 = sbr.rel (%p323) target = $region12
      $region11: #{bottleneck_pallas.1} parent=5 // pred_region
        %s327 = ssub.s32 %s25, 1
        // Predicated region
        $region13: #{bottleneck_pallas.1} parent=11 // pred_check
          %p328 = pneg %p72
        $region14: #{bottleneck_pallas.1} parent=11 // pred_check_branch
          %330 = sbr.rel (%p328) target = $region16
        $region15: #{bottleneck_pallas.1} parent=11 // pred_region
          _
        $region16: #{bottleneck_pallas.1} parent=11 // pred_fallthru
          _
        // Predicated region
        $region17: #{bottleneck_pallas.1} parent=11 // pred_check
          %p331 = pneg %p93
        $region18: #{bottleneck_pallas.1} parent=11 // pred_check_branch
          %333 = sbr.rel (%p331) target = $region20
        $region19: #{bottleneck_pallas.1} parent=11 // pred_region
          _
        $region20: #{bottleneck_pallas.1} parent=11 // pred_fallthru
          _
        // Predicated region
        $region21: #{bottleneck_pallas.1} parent=11 // pred_check
          %p334 = pneg %p114
        $region22: #{bottleneck_pallas.1} parent=11 // pred_check_branch
          %336 = sbr.rel (%p334) target = $region24
        $region23: #{bottleneck_pallas.1} parent=11 // pred_region
          _
        $region24: #{bottleneck_pallas.1} parent=11 // pred_fallthru
          _
        // Predicated region
        $region25: #{bottleneck_pallas.1} parent=11 // pred_check
          %p337 = pneg %p135
        $region26: #{bottleneck_pallas.1} parent=11 // pred_check_branch
          %339 = sbr.rel (%p337) target = $region28
        $region27: #{bottleneck_pallas.1} parent=11 // pred_region
          _
        $region28: #{bottleneck_pallas.1} parent=11 // pred_fallthru
          _
        // Predicated region
        $region29: #{bottleneck_pallas.1} parent=11 // pred_check
          %p340 = pneg %p156
        $region30: #{bottleneck_pallas.1} parent=11 // pred_check_branch
          %342 = sbr.rel (%p340) target = $region32
        $region31: #{bottleneck_pallas.1} parent=11 // pred_region
          _
        $region32: #{bottleneck_pallas.1} parent=11 // pred_fallthru
          _
        // Predicated region
        $region33: #{bottleneck_pallas.1} parent=11 // pred_check
          %p343 = pneg %p177
        $region34: #{bottleneck_pallas.1} parent=11 // pred_check_branch
          %345 = sbr.rel (%p343) target = $region36
        $region35: #{bottleneck_pallas.1} parent=11 // pred_region
          _
        $region36: #{bottleneck_pallas.1} parent=11 // pred_fallthru
          _
        // Predicated region
        $region37: #{bottleneck_pallas.1} parent=11 // pred_check
          %p346 = pneg %p198
        $region38: #{bottleneck_pallas.1} parent=11 // pred_check_branch
          %348 = sbr.rel (%p346) target = $region40
        $region39: #{bottleneck_pallas.1} parent=11 // pred_region
          _
        $region40: #{bottleneck_pallas.1} parent=11 // pred_fallthru
          _
        // Predicated region
        $region41: #{bottleneck_pallas.1} parent=11 // pred_check
          %p349 = pneg %p219
        $region42: #{bottleneck_pallas.1} parent=11 // pred_check_branch
          %351 = sbr.rel (%p349) target = $region44
        $region43: #{bottleneck_pallas.1} parent=11 // pred_region
          _
        $region44: #{bottleneck_pallas.1} parent=11 // pred_fallthru
          _
        // Predicated region
        $region45: #{bottleneck_pallas.1} parent=11 // pred_check
          %p352 = pneg %p240
        $region46: #{bottleneck_pallas.1} parent=11 // pred_check_branch
          %354 = sbr.rel (%p352) target = $region48
        $region47: #{bottleneck_pallas.1} parent=11 // pred_region
          _
        $region48: #{bottleneck_pallas.1} parent=11 // pred_fallthru
          _
        // Predicated region
        $region49: #{bottleneck_pallas.1} parent=11 // pred_check
          %p355 = pneg %p261
        $region50: #{bottleneck_pallas.1} parent=11 // pred_check_branch
          %357 = sbr.rel (%p355) target = $region52
        $region51: #{bottleneck_pallas.1} parent=11 // pred_region
          _
        $region52: #{bottleneck_pallas.1} parent=11 // pred_fallthru
          _
      $region12: #{bottleneck_pallas.1} parent=5 // pred_fallthru
        _
      %p358 = scmp.lt.s32.totalorder %s25, 2
      // Predicated region
      $region53: #{bottleneck_pallas.1} parent=5 // pred_check
        %p359 = pneg %p358
      $region54: #{bottleneck_pallas.1} parent=5 // pred_check_branch
        %361 = sbr.rel (%p359) target = $region56
      $region55: #{bottleneck_pallas.1} parent=5 // pred_region
        // Predicated region
        $region57: #{bottleneck_pallas.1} parent=55 // pred_check
          %p362 = pneg %p45
        $region58: #{bottleneck_pallas.1} parent=55 // pred_check_branch
          %364 = sbr.rel (%p362) target = $region60
        $region59: #{bottleneck_pallas.1} parent=55 // pred_region
          %p365 = scmp.lt.s32.totalorder %s25, 1
          %s366 = scalar_select %p365, %s25, 1
          %s367 = smul.addr %s366, 32
          %s368 = smul.addr %s367, 8
          %s369 = scalar_lea.vmem %s0, %s368
        $region60: #{bottleneck_pallas.1} parent=55 // pred_fallthru
          _
      $region56: #{bottleneck_pallas.1} parent=5 // pred_fallthru
        _
      %p370 = scmp.le.s32.totalorder 1, %s25
      %p371 = scmp.lt.s32.totalorder %s25, 3
      %p372 = pnand %p370, %p371
      %p373 = pneg %p372
      // Predicated region
      $region61: #{bottleneck_pallas.1} parent=5 // pred_check
        _
      $region62: #{bottleneck_pallas.1} parent=5 // pred_check_branch
        %375 = sbr.rel (%p372) target = $region64
      $region63: #{bottleneck_pallas.1} parent=5 // pred_region
        %s376 = ssub.s32 %s25, 1
        %p377 = scmp.lt.s32.totalorder %s30, 1
        %s378 = scalar_select %p377, %s30, 1
        %s379 = smul.addr %s378, 32
        %s380 = smul.addr %s379, 8
        %s381 = scalar_lea.vmem %s0, %s380
        %p382 = pneg %p51
        %p383 = pneg %p48
        %p384 = pneg %p72
        %p385 = pneg %p69
        %p386 = pneg %p93
        %p387 = pneg %p90
        %p388 = pneg %p114
        %p389 = pneg %p111
        %p390 = pneg %p135
        %p391 = pneg %p132
        %p392 = pneg %p156
        %p393 = pneg %p153
        %p394 = pneg %p177
        %p395 = pneg %p174
        %p396 = pneg %p198
        %p397 = pneg %p195
        %p398 = pneg %p219
        %p399 = pneg %p216
        %p400 = pneg %p240
        %p401 = pneg %p237
        %p402 = pneg %p261
        %p403 = pneg %p258
        %p404 = pneg %p287
        %p405 = pneg %p284
        %s406 = sand.u32 %s274, 1
        %s407 = scalar_lea.sflag [#allocation3], %s406
        %s408 = sand.u32 %s274, 1
        %s409 = smul.addr %s408, 256
        %s410 = scalar_lea.vmem [#allocation2], %s409
        %p411 = pneg %p313
        %p412 = pneg %p310
        %s413 = sand.u32 %s300, 1
        %s414 = scalar_lea.sflag [#allocation5], %s413
        %s415 = sand.u32 %s300, 1
        %s416 = smul.addr %s415, 256
        %s417 = scalar_lea.vmem [#allocation4], %s416
        %p418 = scmp.lt.s32.totalorder %s30, 1
        %s419 = scalar_select %p418, %s30, 1
        %s420 = smul.addr %s419, 32
        %s421 = smul.addr %s420, 8
        %s422 = scalar_lea.vmem %s0, %s421
        %v424 = vld [vmem:[%s422] sm:$0xff]
        %v425 = vld [vmem:[%s422 + $0x8] sm:$0xff]
        %v426 = vld [vmem:[%s422 + $0x10] sm:$0xff]
        %v427 = vld [vmem:[%s422 + $0x18] sm:$0xff]
        %v428 = vld [vmem:[%s422 + $0x20] sm:$0xff]
        %v429 = vld [vmem:[%s422 + $0x28] sm:$0xff]
        %v430 = vld [vmem:[%s422 + $0x30] sm:$0xff]
        %v431 = vld [vmem:[%s422 + $0x38] sm:$0xff]
        %v432 = vld [vmem:[%s422 + $0x40] sm:$0xff]
        %v433 = vld [vmem:[%s422 + $0x48] sm:$0xff]
        %v434 = vld [vmem:[%s422 + $0x50] sm:$0xff]
        %v435 = vld [vmem:[%s422 + $0x58] sm:$0xff]
        %v436 = vld [vmem:[%s422 + $0x60] sm:$0xff]
        %v437 = vld [vmem:[%s422 + $0x68] sm:$0xff]
        %v438 = vld [vmem:[%s422 + $0x70] sm:$0xff]
        %v439 = vld [vmem:[%s422 + $0x78] sm:$0xff]
        %v440 = vld [vmem:[%s422 + $0x80] sm:$0xff]
        %v441 = vld [vmem:[%s422 + $0x88] sm:$0xff]
        %v442 = vld [vmem:[%s422 + $0x90] sm:$0xff]
        %v443 = vld [vmem:[%s422 + $0x98] sm:$0xff]
        %v444 = vld [vmem:[%s422 + $0xa0] sm:$0xff]
        %v445 = vld [vmem:[%s422 + $0xa8] sm:$0xff]
        %v446 = vld [vmem:[%s422 + $0xb0] sm:$0xff]
        %v447 = vld [vmem:[%s422 + $0xb8] sm:$0xff]
        %v448 = vld [vmem:[%s422 + $0xc0] sm:$0xff]
        %v449 = vld [vmem:[%s422 + $0xc8] sm:$0xff]
        %v450 = vld [vmem:[%s422 + $0xd0] sm:$0xff]
        %v451 = vld [vmem:[%s422 + $0xd8] sm:$0xff]
        %v452 = vld [vmem:[%s422 + $0xe0] sm:$0xff]
        %v453 = vld [vmem:[%s422 + $0xe8] sm:$0xff]
        %v454 = vld [vmem:[%s422 + $0xf0] sm:$0xff]
        %v455 = vld [vmem:[%s422 + $0xf8] sm:$0xff]
        %v456 = vpack.c.bf16 %v425, %v424
        %v457 = vpack.c.bf16 %v427, %v426
        %v458 = vpack.c.bf16 %v429, %v428
        %v459 = vpack.c.bf16 %v431, %v430
        %v460 = vpack.c.bf16 %v433, %v432
        %v461 = vpack.c.bf16 %v435, %v434
        %v462 = vpack.c.bf16 %v437, %v436
        %v463 = vpack.c.bf16 %v439, %v438
        %v464 = vpack.c.bf16 %v441, %v440
        %v465 = vpack.c.bf16 %v443, %v442
        %v466 = vpack.c.bf16 %v445, %v444
        %v467 = vpack.c.bf16 %v447, %v446
        %v468 = vpack.c.bf16 %v449, %v448
        %v469 = vpack.c.bf16 %v451, %v450
        %v470 = vpack.c.bf16 %v453, %v452
        %v471 = vpack.c.bf16 %v455, %v454
        %v472 = vld [vmem:[%s1] sm:$0xf]
        %v473 = vld [vmem:[%s1 + $0x4] sm:$0xf]
        %v474 = vld [vmem:[%s1 + $0x8] sm:$0xf]
        %v475 = vld [vmem:[%s1 + $0xc] sm:$0xf]
        %v476 = vld [vmem:[%s1 + $0x10] sm:$0xf]
        %v477 = vld [vmem:[%s1 + $0x14] sm:$0xf]
        %v478 = vld [vmem:[%s1 + $0x18] sm:$0xf]
        %v479 = vld [vmem:[%s1 + $0x1c] sm:$0xf]
        %v480 = vld [vmem:[%s1 + $0x20] sm:$0xf]
        %v481 = vld [vmem:[%s1 + $0x24] sm:$0xf]
        %v482 = vld [vmem:[%s1 + $0x28] sm:$0xf]
        %v483 = vld [vmem:[%s1 + $0x2c] sm:$0xf]
        %v484 = vld [vmem:[%s1 + $0x30] sm:$0xf]
        %v485 = vld [vmem:[%s1 + $0x34] sm:$0xf]
        %v486 = vld [vmem:[%s1 + $0x38] sm:$0xf]
        %v487 = vld [vmem:[%s1 + $0x3c] sm:$0xf]
        %v488 = vld [vmem:[%s2] sm:$0x1]
        %v490 = vlaneseq
        %v491 = vshrl.u32 %v490, 7
        %v492 = vsub.s32 0, %v491
        %v493 = vrot.slane %v488, %v492
        %v511 = vunpack.c.l.b16 %v472
        %v512 = vunpack.c.l.b16 %v473
        %v513 = vunpack.c.l.b16 %v474
        %v514 = vunpack.c.l.b16 %v475
        %v515 = vunpack.c.l.b16 %v476
        %v516 = vunpack.c.l.b16 %v477
        %v517 = vunpack.c.l.b16 %v478
        %v518 = vunpack.c.l.b16 %v479
        %v519 = vunpack.c.l.b16 %v480
        %v520 = vunpack.c.l.b16 %v481
        %v521 = vunpack.c.l.b16 %v482
        %v522 = vunpack.c.l.b16 %v483
        %v523 = vunpack.c.l.b16 %v484
        %v524 = vunpack.c.l.b16 %v485
        %v525 = vunpack.c.l.b16 %v486
        %v526 = vunpack.c.l.b16 %v487
        %v527 = vpack.c.b16 %v512, %v511
        %v528 = vpack.c.b16 %v514, %v513
        %v529 = vpack.c.b16 %v516, %v515
        %v530 = vpack.c.b16 %v518, %v517
        %v531 = vpack.c.b16 %v520, %v519
        %v532 = vpack.c.b16 %v522, %v521
        %v533 = vpack.c.b16 %v524, %v523
        %v534 = vpack.c.b16 %v526, %v525
        %543 = vmatprep.subr.bf16.mxu0 0
        %544 = vmatpush1.bf16.msra.mxu0 %v527
        %545 = vmatprep.subr.bf16.mxu0 0
        %546 = vmatpush1.bf16.msra.mxu0 %v528
        %547 = vmatprep.subr.bf16.mxu0 0
        %548 = vmatpush1.bf16.msra.mxu0 %v529
        %549 = vmatprep.subr.bf16.mxu0 0
        %550 = vmatpush1.bf16.msra.mxu0 %v530
        %551 = vmatprep.subr.bf16.mxu0 0
        %552 = vmatpush1.bf16.msra.mxu0 %v531
        %553 = vmatprep.subr.bf16.mxu0 0
        %554 = vmatpush1.bf16.msra.mxu0 %v532
        %555 = vmatprep.subr.bf16.mxu0 0
        %556 = vmatpush1.bf16.msra.mxu0 %v533
        %557 = vmatprep.subr.bf16.mxu0 0
        %558 = vmatpush1.bf16.msra.mxu0 %v534
        %559 = vmatprep.subr.bf16.mxu0 0
        %560 = vmatpush1.bf16.msra.mxu0 0
        %561 = vmatprep.subr.bf16.mxu0 0
        %562 = vmatpush1.bf16.msra.mxu0 0
        %563 = vmatprep.subr.bf16.mxu0 0
        %564 = vmatpush1.bf16.msra.mxu0 0
        %565 = vmatprep.subr.bf16.mxu0 0
        %566 = vmatpush1.bf16.msra.mxu0 0
        %567 = vmatprep.subr.bf16.mxu0 0
        %568 = vmatpush1.bf16.msra.mxu0 0
        %569 = vmatprep.subr.bf16.mxu0 0
        %570 = vmatpush1.bf16.msra.mxu0 0
        %571 = vmatprep.subr.bf16.mxu0 0
        %572 = vmatpush1.bf16.msra.mxu0 0
        %573 = vmatprep.subr.bf16.mxu0 0
        %574 = vmatpush1.bf16.msra.mxu0 0
        %575 = vmatprep.mubr.bf16.mxu0 0
        %576 = vmatmul.mubr.bf16.gmra.mrb[0].mxu0 %v456
        %v577 = vpop.f32.mrb[0].mxu0
        %v578 = vadd.f32 %v493, %v577
        %v579 = vpop.f32.mrb[0].mxu0
        %v580 = vpop.f32.mrb[0].mxu0
        %v581 = vadd.f32 %v493, %v580
        %v582 = vpop.f32.mrb[0].mxu0
        %583 = vmatprep.mubr.bf16.mxu0 0
        %584 = vmatmul.mubr.bf16.gmra.mrb[0].mxu0 %v457
        %v585 = vpop.f32.mrb[0].mxu0
        %v586 = vadd.f32 %v493, %v585
        %v587 = vpop.f32.mrb[0].mxu0
        %v588 = vpop.f32.mrb[0].mxu0
        %v589 = vadd.f32 %v493, %v588
        %v590 = vpop.f32.mrb[0].mxu0
        %591 = vmatprep.mubr.bf16.mxu0 0
        %592 = vmatmul.mubr.bf16.gmra.mrb[0].mxu0 %v458
        %v593 = vpop.f32.mrb[0].mxu0
        %v594 = vadd.f32 %v493, %v593
        %v595 = vpop.f32.mrb[0].mxu0
        %v596 = vpop.f32.mrb[0].mxu0
        %v597 = vadd.f32 %v493, %v596
        %v598 = vpop.f32.mrb[0].mxu0
        %599 = vmatprep.mubr.bf16.mxu0 0
        %600 = vmatmul.mubr.bf16.gmra.mrb[0].mxu0 %v459
        %v601 = vpop.f32.mrb[0].mxu0
        %v602 = vadd.f32 %v493, %v601
        %v603 = vpop.f32.mrb[0].mxu0
        %v604 = vpop.f32.mrb[0].mxu0
        %v605 = vadd.f32 %v493, %v604
        %v606 = vpop.f32.mrb[0].mxu0
        %607 = vmatprep.mubr.bf16.mxu0 0
        %608 = vmatmul.mubr.bf16.gmra.mrb[0].mxu0 %v460
        %v609 = vpop.f32.mrb[0].mxu0
        %v610 = vadd.f32 %v493, %v609
        %v611 = vpop.f32.mrb[0].mxu0
        %v612 = vpop.f32.mrb[0].mxu0
        %v613 = vadd.f32 %v493, %v612
        %v614 = vpop.f32.mrb[0].mxu0
        %615 = vmatprep.mubr.bf16.mxu0 0
        %616 = vmatmul.mubr.bf16.gmra.mrb[0].mxu0 %v461
        %v617 = vpop.f32.mrb[0].mxu0
        %v618 = vadd.f32 %v493, %v617
        %v619 = vpop.f32.mrb[0].mxu0
        %v620 = vpop.f32.mrb[0].mxu0
        %v621 = vadd.f32 %v493, %v620
        %v622 = vpop.f32.mrb[0].mxu0
        %623 = vmatprep.mubr.bf16.mxu0 0
        %624 = vmatmul.mubr.bf16.gmra.mrb[0].mxu0 %v462
        %v625 = vpop.f32.mrb[0].mxu0
        %v626 = vadd.f32 %v493, %v625
        %v627 = vpop.f32.mrb[0].mxu0
        %v628 = vpop.f32.mrb[0].mxu0
        %v629 = vadd.f32 %v493, %v628
        %v630 = vpop.f32.mrb[0].mxu0
        %631 = vmatprep.mubr.bf16.mxu0 0
        %632 = vmatmul.mubr.bf16.gmra.mrb[0].mxu0 %v463
        %v633 = vpop.f32.mrb[0].mxu0
        %v634 = vadd.f32 %v493, %v633
        %v635 = vpop.f32.mrb[0].mxu0
        %v636 = vpop.f32.mrb[0].mxu0
        %v637 = vadd.f32 %v493, %v636
        %v638 = vpop.f32.mrb[0].mxu0
        %639 = vmatprep.mubr.bf16.mxu0 0
        %640 = vmatmul.mubr.bf16.gmra.mrb[0].mxu0 %v464
        %v641 = vpop.f32.mrb[0].mxu0
        %v642 = vadd.f32 %v493, %v641
        %v643 = vpop.f32.mrb[0].mxu0
        %v644 = vpop.f32.mrb[0].mxu0
        %v645 = vadd.f32 %v493, %v644
        %v646 = vpop.f32.mrb[0].mxu0
        %647 = vmatprep.mubr.bf16.mxu0 0
        %648 = vmatmul.mubr.bf16.gmra.mrb[0].mxu0 %v465
        %v649 = vpop.f32.mrb[0].mxu0
        %v650 = vadd.f32 %v493, %v649
        %v651 = vpop.f32.mrb[0].mxu0
        %v652 = vpop.f32.mrb[0].mxu0
        %v653 = vadd.f32 %v493, %v652
        %v654 = vpop.f32.mrb[0].mxu0
        %655 = vmatprep.mubr.bf16.mxu0 0
        %656 = vmatmul.mubr.bf16.gmra.mrb[0].mxu0 %v466
        %v657 = vpop.f32.mrb[0].mxu0
        %v658 = vadd.f32 %v493, %v657
        %v659 = vpop.f32.mrb[0].mxu0
        %v660 = vpop.f32.mrb[0].mxu0
        %v661 = vadd.f32 %v493, %v660
        %v662 = vpop.f32.mrb[0].mxu0
        %663 = vmatprep.mubr.bf16.mxu0 0
        %664 = vmatmul.mubr.bf16.gmra.mrb[0].mxu0 %v467
        %v665 = vpop.f32.mrb[0].mxu0
        %v666 = vadd.f32 %v493, %v665
        %v667 = vpop.f32.mrb[0].mxu0
        %v668 = vpop.f32.mrb[0].mxu0
        %v669 = vadd.f32 %v493, %v668
        %v670 = vpop.f32.mrb[0].mxu0
        %671 = vmatprep.mubr.bf16.mxu0 0
        %672 = vmatmul.mubr.bf16.gmra.mrb[0].mxu0 %v468
        %v673 = vpop.f32.mrb[0].mxu0
        %v674 = vadd.f32 %v493, %v673
        %v675 = vpop.f32.mrb[0].mxu0
        %v676 = vpop.f32.mrb[0].mxu0
        %v677 = vadd.f32 %v493, %v676
        %v678 = vpop.f32.mrb[0].mxu0
        %679 = vmatprep.mubr.bf16.mxu0 0
        %680 = vmatmul.mubr.bf16.gmra.mrb[0].mxu0 %v469
        %v681 = vpop.f32.mrb[0].mxu0
        %v682 = vadd.f32 %v493, %v681
        %v683 = vpop.f32.mrb[0].mxu0
        %v684 = vpop.f32.mrb[0].mxu0
        %v685 = vadd.f32 %v493, %v684
        %v686 = vpop.f32.mrb[0].mxu0
        %687 = vmatprep.mubr.bf16.mxu0 0
        %688 = vmatmul.mubr.bf16.gmra.mrb[0].mxu0 %v470
        %v689 = vpop.f32.mrb[0].mxu0
        %v690 = vadd.f32 %v493, %v689
        %v691 = vpop.f32.mrb[0].mxu0
        %v692 = vpop.f32.mrb[0].mxu0
        %v693 = vadd.f32 %v493, %v692
        %v694 = vpop.f32.mrb[0].mxu0
        %695 = vmatprep.mubr.bf16.mxu0 0
        %696 = vmatmul.mubr.bf16.gmra.mrb[0].mxu0 %v471
        %v697 = vpop.f32.mrb[0].mxu0
        %v698 = vadd.f32 %v493, %v697
        %v699 = vpop.f32.mrb[0].mxu0
        %v700 = vpop.f32.mrb[0].mxu0
        %v701 = vadd.f32 %v493, %v700
        %v702 = vpop.f32.mrb[0].mxu0
        %703 = vdwg.mxu0
        %v704 = vmax.f32 %v578, 0.0
        %v705 = vmax.f32 %v581, 0.0
        %v706 = vmax.f32 %v586, 0.0
        %v707 = vmax.f32 %v589, 0.0
        %v708 = vmax.f32 %v594, 0.0
        %v709 = vmax.f32 %v597, 0.0
        %v710 = vmax.f32 %v602, 0.0
        %v711 = vmax.f32 %v605, 0.0
        %v712 = vmax.f32 %v610, 0.0
        %v713 = vmax.f32 %v613, 0.0
        %v714 = vmax.f32 %v618, 0.0
        %v715 = vmax.f32 %v621, 0.0
        %v716 = vmax.f32 %v626, 0.0
        %v717 = vmax.f32 %v629, 0.0
        %v718 = vmax.f32 %v634, 0.0
        %v719 = vmax.f32 %v637, 0.0
        %v720 = vmax.f32 %v642, 0.0
        %v721 = vmax.f32 %v645, 0.0
        %v722 = vmax.f32 %v650, 0.0
        %v723 = vmax.f32 %v653, 0.0
        %v724 = vmax.f32 %v658, 0.0
        %v725 = vmax.f32 %v661, 0.0
        %v726 = vmax.f32 %v666, 0.0
        %v727 = vmax.f32 %v669, 0.0
        %v728 = vmax.f32 %v674, 0.0
        %v729 = vmax.f32 %v677, 0.0
        %v730 = vmax.f32 %v682, 0.0
        %v731 = vmax.f32 %v685, 0.0
        %v732 = vmax.f32 %v690, 0.0
        %v733 = vmax.f32 %v693, 0.0
        %v734 = vmax.f32 %v698, 0.0
        %v735 = vmax.f32 %v701, 0.0
        %vm769 = vcmask 1040384
        %v770 = vrot.slane 0.0, 7
        %v771 = vsel %vm769, %v770, %v770
        %v772 = vrot.slane %v704, 7
        %v773 = vrot.slane %v705, 7
        %v774 = vsel %vm769, %v772, %v773
        %v775 = vrot.slane %v706, 7
        %v776 = vrot.slane %v707, 7
        %v777 = vsel %vm769, %v775, %v776
        %v778 = vrot.slane %v708, 7
        %v779 = vrot.slane %v709, 7
        %v780 = vsel %vm769, %v778, %v779
        %v781 = vrot.slane %v710, 7
        %v782 = vrot.slane %v711, 7
        %v783 = vsel %vm769, %v781, %v782
        %v784 = vrot.slane %v712, 7
        %v785 = vrot.slane %v713, 7
        %v786 = vsel %vm769, %v784, %v785
        %v787 = vrot.slane %v714, 7
        %v788 = vrot.slane %v715, 7
        %v789 = vsel %vm769, %v787, %v788
        %v790 = vrot.slane %v716, 7
        %v791 = vrot.slane %v717, 7
        %v792 = vsel %vm769, %v790, %v791
        %v793 = vrot.slane %v718, 7
        %v794 = vrot.slane %v719, 7
        %v795 = vsel %vm769, %v793, %v794
        %v796 = vrot.slane %v720, 7
        %v797 = vrot.slane %v721, 7
        %v798 = vsel %vm769, %v796, %v797
        %v799 = vrot.slane %v722, 7
        %v800 = vrot.slane %v723, 7
        %v801 = vsel %vm769, %v799, %v800
        %v802 = vrot.slane %v724, 7
        %v803 = vrot.slane %v725, 7
        %v804 = vsel %vm769, %v802, %v803
        %v805 = vrot.slane %v726, 7
        %v806 = vrot.slane %v727, 7
        %v807 = vsel %vm769, %v805, %v806
        %v808 = vrot.slane %v728, 7
        %v809 = vrot.slane %v729, 7
        %v810 = vsel %vm769, %v808, %v809
        %v811 = vrot.slane %v730, 7
        %v812 = vrot.slane %v731, 7
        %v813 = vsel %vm769, %v811, %v812
        %v814 = vrot.slane %v732, 7
        %v815 = vrot.slane %v733, 7
        %v816 = vsel %vm769, %v814, %v815
        %v817 = vrot.slane %v734, 7
        %v818 = vrot.slane %v735, 7
        %v819 = vsel %vm769, %v817, %v818
        %v869 = vsel %vm769, 0.0, %v770
        %v870 = vsel %vm769, 0.0, %v772
        %v871 = vsel %vm769, 0.0, %v775
        %v872 = vsel %vm769, 0.0, %v778
        %v873 = vsel %vm769, 0.0, %v781
        %v874 = vsel %vm769, 0.0, %v784
        %v875 = vsel %vm769, 0.0, %v787
        %v876 = vsel %vm769, 0.0, %v790
        %v877 = vsel %vm769, 0.0, %v793
        %v878 = vsel %vm769, 0.0, %v796
        %v879 = vsel %vm769, 0.0, %v799
        %v880 = vsel %vm769, 0.0, %v802
        %v881 = vsel %vm769, 0.0, %v805
        %v882 = vsel %vm769, 0.0, %v808
        %v883 = vsel %vm769, 0.0, %v811
        %v884 = vsel %vm769, 0.0, %v814
        %v885 = vsel %vm769, 0.0, %v817
        %v886 = vsel %vm769, %v770, 0.0
        %v887 = vsel %vm769, %v773, 0.0
        %v888 = vsel %vm769, %v776, 0.0
        %v889 = vsel %vm769, %v779, 0.0
        %v890 = vsel %vm769, %v782, 0.0
        %v891 = vsel %vm769, %v785, 0.0
        %v892 = vsel %vm769, %v788, 0.0
        %v893 = vsel %vm769, %v791, 0.0
        %v894 = vsel %vm769, %v794, 0.0
        %v895 = vsel %vm769, %v797, 0.0
        %v896 = vsel %vm769, %v800, 0.0
        %v897 = vsel %vm769, %v803, 0.0
        %v898 = vsel %vm769, %v806, 0.0
        %v899 = vsel %vm769, %v809, 0.0
        %v900 = vsel %vm769, %v812, 0.0
        %v901 = vsel %vm769, %v815, 0.0
        %v902 = vsel %vm769, %v818, 0.0
        %vm935 = vcmask 1046528
        %v936 = vrot.slane %v869, 1
        %v937 = vrot.slane %v771, 1
        %v938 = vsel %vm935, %v936, %v937
        %v939 = vrot.slane %v886, 1
        %v940 = vsel %vm935, %v937, %v939
        %v941 = vrot.slane %v870, 1
        %v942 = vrot.slane %v774, 1
        %v943 = vsel %vm935, %v941, %v942
        %v944 = vrot.slane %v887, 1
        %v945 = vsel %vm935, %v942, %v944
        %v946 = vrot.slane %v871, 1
        %v947 = vrot.slane %v777, 1
        %v948 = vsel %vm935, %v946, %v947
        %v949 = vrot.slane %v888, 1
        %v950 = vsel %vm935, %v947, %v949
        %v951 = vrot.slane %v872, 1
        %v952 = vrot.slane %v780, 1
        %v953 = vsel %vm935, %v951, %v952
        %v954 = vrot.slane %v889, 1
        %v955 = vsel %vm935, %v952, %v954
        %v956 = vrot.slane %v873, 1
        %v957 = vrot.slane %v783, 1
        %v958 = vsel %vm935, %v956, %v957
        %v959 = vrot.slane %v890, 1
        %v960 = vsel %vm935, %v957, %v959
        %v961 = vrot.slane %v874, 1
        %v962 = vrot.slane %v786, 1
        %v963 = vsel %vm935, %v961, %v962
        %v964 = vrot.slane %v891, 1
        %v965 = vsel %vm935, %v962, %v964
        %v966 = vrot.slane %v875, 1
        %v967 = vrot.slane %v789, 1
        %v968 = vsel %vm935, %v966, %v967
        %v969 = vrot.slane %v892, 1
        %v970 = vsel %vm935, %v967, %v969
        %v971 = vrot.slane %v876, 1
        %v972 = vrot.slane %v792, 1
        %v973 = vsel %vm935, %v971, %v972
        %v974 = vrot.slane %v893, 1
        %v975 = vsel %vm935, %v972, %v974
        %v976 = vrot.slane %v877, 1
        %v977 = vrot.slane %v795, 1
        %v978 = vsel %vm935, %v976, %v977
        %v979 = vrot.slane %v894, 1
        %v980 = vsel %vm935, %v977, %v979
        %v981 = vrot.slane %v878, 1
        %v982 = vrot.slane %v798, 1
        %v983 = vsel %vm935, %v981, %v982
        %v984 = vrot.slane %v895, 1
        %v985 = vsel %vm935, %v982, %v984
        %v986 = vrot.slane %v879, 1
        %v987 = vrot.slane %v801, 1
        %v988 = vsel %vm935, %v986, %v987
        %v989 = vrot.slane %v896, 1
        %v990 = vsel %vm935, %v987, %v989
        %v991 = vrot.slane %v880, 1
        %v992 = vrot.slane %v804, 1
        %v993 = vsel %vm935, %v991, %v992
        %v994 = vrot.slane %v897, 1
        %v995 = vsel %vm935, %v992, %v994
        %v996 = vrot.slane %v881, 1
        %v997 = vrot.slane %v807, 1
        %v998 = vsel %vm935, %v996, %v997
        %v999 = vrot.slane %v898, 1
        %v1000 = vsel %vm935, %v997, %v999
        %v1001 = vrot.slane %v882, 1
        %v1002 = vrot.slane %v810, 1
        %v1003 = vsel %vm935, %v1001, %v1002
        %v1004 = vrot.slane %v899, 1
        %v1005 = vsel %vm935, %v1002, %v1004
        %v1006 = vrot.slane %v883, 1
        %v1007 = vrot.slane %v813, 1
        %v1008 = vsel %vm935, %v1006, %v1007
        %v1009 = vrot.slane %v900, 1
        %v1010 = vsel %vm935, %v1007, %v1009
        %v1011 = vrot.slane %v884, 1
        %v1012 = vrot.slane %v816, 1
        %v1013 = vsel %vm935, %v1011, %v1012
        %v1014 = vrot.slane %v901, 1
        %v1015 = vsel %vm935, %v1012, %v1014
        %vm1016 = vcmask 1045504
        %v1017 = vrot.slane %v869, 2
        %v1018 = vrot.slane %v771, 2
        %v1019 = vsel %vm1016, %v1017, %v1018
        %v1020 = vrot.slane %v886, 2
        %v1021 = vsel %vm1016, %v1018, %v1020
        %v1022 = vrot.slane %v870, 2
        %v1023 = vrot.slane %v774, 2
        %v1024 = vsel %vm1016, %v1022, %v1023
        %v1025 = vrot.slane %v887, 2
        %v1026 = vsel %vm1016, %v1023, %v1025
        %v1027 = vrot.slane %v871, 2
        %v1028 = vrot.slane %v777, 2
        %v1029 = vsel %vm1016, %v1027, %v1028
        %v1030 = vrot.slane %v888, 2
        %v1031 = vsel %vm1016, %v1028, %v1030
        %v1032 = vrot.slane %v872, 2
        %v1033 = vrot.slane %v780, 2
        %v1034 = vsel %vm1016, %v1032, %v1033
        %v1035 = vrot.slane %v889, 2
        %v1036 = vsel %vm1016, %v1033, %v1035
        %v1037 = vrot.slane %v873, 2
        %v1038 = vrot.slane %v783, 2
        %v1039 = vsel %vm1016, %v1037, %v1038
        %v1040 = vrot.slane %v890, 2
        %v1041 = vsel %vm1016, %v1038, %v1040
        %v1042 = vrot.slane %v874, 2
        %v1043 = vrot.slane %v786, 2
        %v1044 = vsel %vm1016, %v1042, %v1043
        %v1045 = vrot.slane %v891, 2
        %v1046 = vsel %vm1016, %v1043, %v1045
        %v1047 = vrot.slane %v875, 2
        %v1048 = vrot.slane %v789, 2
        %v1049 = vsel %vm1016, %v1047, %v1048
        %v1050 = vrot.slane %v892, 2
        %v1051 = vsel %vm1016, %v1048, %v1050
        %v1052 = vrot.slane %v876, 2
        %v1053 = vrot.slane %v792, 2
        %v1054 = vsel %vm1016, %v1052, %v1053
        %v1055 = vrot.slane %v893, 2
        %v1056 = vsel %vm1016, %v1053, %v1055
        %v1057 = vrot.slane %v877, 2
        %v1058 = vrot.slane %v795, 2
        %v1059 = vsel %vm1016, %v1057, %v1058
        %v1060 = vrot.slane %v894, 2
        %v1061 = vsel %vm1016, %v1058, %v1060
        %v1062 = vrot.slane %v878, 2
        %v1063 = vrot.slane %v798, 2
        %v1064 = vsel %vm1016, %v1062, %v1063
        %v1065 = vrot.slane %v895, 2
        %v1066 = vsel %vm1016, %v1063, %v1065
        %v1067 = vrot.slane %v879, 2
        %v1068 = vrot.slane %v801, 2
        %v1069 = vsel %vm1016, %v1067, %v1068
        %v1070 = vrot.slane %v896, 2
        %v1071 = vsel %vm1016, %v1068, %v1070
        %v1072 = vrot.slane %v880, 2
        %v1073 = vrot.slane %v804, 2
        %v1074 = vsel %vm1016, %v1072, %v1073
        %v1075 = vrot.slane %v897, 2
        %v1076 = vsel %vm1016, %v1073, %v1075
        %v1077 = vrot.slane %v881, 2
        %v1078 = vrot.slane %v807, 2
        %v1079 = vsel %vm1016, %v1077, %v1078
        %v1080 = vrot.slane %v898, 2
        %v1081 = vsel %vm1016, %v1078, %v1080
        %v1082 = vrot.slane %v882, 2
        %v1083 = vrot.slane %v810, 2
        %v1084 = vsel %vm1016, %v1082, %v1083
        %v1085 = vrot.slane %v899, 2
        %v1086 = vsel %vm1016, %v1083, %v1085
        %v1087 = vrot.slane %v883, 2
        %v1088 = vrot.slane %v813, 2
        %v1089 = vsel %vm1016, %v1087, %v1088
        %v1090 = vrot.slane %v900, 2
        %v1091 = vsel %vm1016, %v1088, %v1090
        %v1092 = vrot.slane %v884, 2
        %v1093 = vrot.slane %v816, 2
        %v1094 = vsel %vm1016, %v1092, %v1093
        %v1095 = vrot.slane %v901, 2
        %v1096 = vsel %vm1016, %v1093, %v1095
        %v1099 = vrot.slane %v885, 1
        %v1100 = vrot.slane %v819, 1
        %v1101 = vsel %vm935, %v1099, %v1100
        %v1102 = vrot.slane %v902, 1
        %v1103 = vsel %vm935, %v1100, %v1102
        %v1136 = vrot.slane %v885, 2
        %v1137 = vrot.slane %v819, 2
        %v1138 = vsel %vm1016, %v1136, %v1137
        %v1139 = vrot.slane %v902, 2
        %v1140 = vsel %vm1016, %v1137, %v1139
        %1173 = vrot.lane.b32.xlu0 %v938, 32
        %v1174 = vpop.permute.xlu0 %1173
        %1175 = vrot.lane.b32.xlu0 %v940, 32
        %v1176 = vpop.permute.xlu0 %1175
        %1177 = vrot.lane.b32.xlu0 %v943, 32
        %v1178 = vpop.permute.xlu0 %1177
        %1179 = vrot.lane.b32.xlu0 %v945, 32
        %v1180 = vpop.permute.xlu0 %1179
        %1181 = vrot.lane.b32.xlu0 %v948, 32
        %v1182 = vpop.permute.xlu0 %1181
        %1183 = vrot.lane.b32.xlu0 %v950, 32
        %v1184 = vpop.permute.xlu0 %1183
        %1185 = vrot.lane.b32.xlu0 %v953, 32
        %v1186 = vpop.permute.xlu0 %1185
        %1187 = vrot.lane.b32.xlu0 %v955, 32
        %v1188 = vpop.permute.xlu0 %1187
        %1189 = vrot.lane.b32.xlu0 %v958, 32
        %v1190 = vpop.permute.xlu0 %1189
        %1191 = vrot.lane.b32.xlu0 %v960, 32
        %v1192 = vpop.permute.xlu0 %1191
        %1193 = vrot.lane.b32.xlu0 %v963, 32
        %v1194 = vpop.permute.xlu0 %1193
        %1195 = vrot.lane.b32.xlu0 %v965, 32
        %v1196 = vpop.permute.xlu0 %1195
        %1197 = vrot.lane.b32.xlu0 %v968, 32
        %v1198 = vpop.permute.xlu0 %1197
        %1199 = vrot.lane.b32.xlu0 %v970, 32
        %v1200 = vpop.permute.xlu0 %1199
        %1201 = vrot.lane.b32.xlu0 %v973, 32
        %v1202 = vpop.permute.xlu0 %1201
        %1203 = vrot.lane.b32.xlu0 %v975, 32
        %v1204 = vpop.permute.xlu0 %1203
        %1205 = vrot.lane.b32.xlu0 %v978, 32
        %v1206 = vpop.permute.xlu0 %1205
        %1207 = vrot.lane.b32.xlu0 %v980, 32
        %v1208 = vpop.permute.xlu0 %1207
        %1209 = vrot.lane.b32.xlu0 %v983, 32
        %v1210 = vpop.permute.xlu0 %1209
        %1211 = vrot.lane.b32.xlu0 %v985, 32
        %v1212 = vpop.permute.xlu0 %1211
        %1213 = vrot.lane.b32.xlu0 %v988, 32
        %v1214 = vpop.permute.xlu0 %1213
        %1215 = vrot.lane.b32.xlu0 %v990, 32
        %v1216 = vpop.permute.xlu0 %1215
        %1217 = vrot.lane.b32.xlu0 %v993, 32
        %v1218 = vpop.permute.xlu0 %1217
        %1219 = vrot.lane.b32.xlu0 %v995, 32
        %v1220 = vpop.permute.xlu0 %1219
        %1221 = vrot.lane.b32.xlu0 %v998, 32
        %v1222 = vpop.permute.xlu0 %1221
        %1223 = vrot.lane.b32.xlu0 %v1000, 32
        %v1224 = vpop.permute.xlu0 %1223
        %1225 = vrot.lane.b32.xlu0 %v1003, 32
        %v1226 = vpop.permute.xlu0 %1225
        %1227 = vrot.lane.b32.xlu0 %v1005, 32
        %v1228 = vpop.permute.xlu0 %1227
        %1229 = vrot.lane.b32.xlu0 %v1008, 32
        %v1230 = vpop.permute.xlu0 %1229
        %1231 = vrot.lane.b32.xlu0 %v1010, 32
        %v1232 = vpop.permute.xlu0 %1231
        %1233 = vrot.lane.b32.xlu0 %v1013, 32
        %v1234 = vpop.permute.xlu0 %1233
        %1235 = vrot.lane.b32.xlu0 %v1015, 32
        %v1236 = vpop.permute.xlu0 %1235
        %1269 = vrot.lane.b32.xlu0 %v1019, 64
        %v1270 = vpop.permute.xlu0 %1269
        %1271 = vrot.lane.b32.xlu0 %v1021, 64
        %v1272 = vpop.permute.xlu0 %1271
        %1273 = vrot.lane.b32.xlu0 %v1024, 64
        %v1274 = vpop.permute.xlu0 %1273
        %1275 = vrot.lane.b32.xlu0 %v1026, 64
        %v1276 = vpop.permute.xlu0 %1275
        %1277 = vrot.lane.b32.xlu0 %v1029, 64
        %v1278 = vpop.permute.xlu0 %1277
        %1279 = vrot.lane.b32.xlu0 %v1031, 64
        %v1280 = vpop.permute.xlu0 %1279
        %1281 = vrot.lane.b32.xlu0 %v1034, 64
        %v1282 = vpop.permute.xlu0 %1281
        %1283 = vrot.lane.b32.xlu0 %v1036, 64
        %v1284 = vpop.permute.xlu0 %1283
        %1285 = vrot.lane.b32.xlu0 %v1039, 64
        %v1286 = vpop.permute.xlu0 %1285
        %1287 = vrot.lane.b32.xlu0 %v1041, 64
        %v1288 = vpop.permute.xlu0 %1287
        %1289 = vrot.lane.b32.xlu0 %v1044, 64
        %v1290 = vpop.permute.xlu0 %1289
        %1291 = vrot.lane.b32.xlu0 %v1046, 64
        %v1292 = vpop.permute.xlu0 %1291
        %1293 = vrot.lane.b32.xlu0 %v1049, 64
        %v1294 = vpop.permute.xlu0 %1293
        %1295 = vrot.lane.b32.xlu0 %v1051, 64
        %v1296 = vpop.permute.xlu0 %1295
        %1297 = vrot.lane.b32.xlu0 %v1054, 64
        %v1298 = vpop.permute.xlu0 %1297
        %1299 = vrot.lane.b32.xlu0 %v1056, 64
        %v1300 = vpop.permute.xlu0 %1299
        %1301 = vrot.lane.b32.xlu0 %v1059, 64
        %v1302 = vpop.permute.xlu0 %1301
        %1303 = vrot.lane.b32.xlu0 %v1061, 64
        %v1304 = vpop.permute.xlu0 %1303
        %1305 = vrot.lane.b32.xlu0 %v1064, 64
        %v1306 = vpop.permute.xlu0 %1305
        %1307 = vrot.lane.b32.xlu0 %v1066, 64
        %v1308 = vpop.permute.xlu0 %1307
        %1309 = vrot.lane.b32.xlu0 %v1069, 64
        %v1310 = vpop.permute.xlu0 %1309
        %1311 = vrot.lane.b32.xlu0 %v1071, 64
        %v1312 = vpop.permute.xlu0 %1311
        %1313 = vrot.lane.b32.xlu0 %v1074, 64
        %v1314 = vpop.permute.xlu0 %1313
        %1315 = vrot.lane.b32.xlu0 %v1076, 64
        %v1316 = vpop.permute.xlu0 %1315
        %1317 = vrot.lane.b32.xlu0 %v1079, 64
        %v1318 = vpop.permute.xlu0 %1317
        %1319 = vrot.lane.b32.xlu0 %v1081, 64
        %v1320 = vpop.permute.xlu0 %1319
        %1321 = vrot.lane.b32.xlu0 %v1084, 64
        %v1322 = vpop.permute.xlu0 %1321
        %1323 = vrot.lane.b32.xlu0 %v1086, 64
        %v1324 = vpop.permute.xlu0 %1323
        %1325 = vrot.lane.b32.xlu0 %v1089, 64
        %v1326 = vpop.permute.xlu0 %1325
        %1327 = vrot.lane.b32.xlu0 %v1091, 64
        %v1328 = vpop.permute.xlu0 %1327
        %1329 = vrot.lane.b32.xlu0 %v1094, 64
        %v1330 = vpop.permute.xlu0 %1329
        %1331 = vrot.lane.b32.xlu0 %v1096, 64
        %v1332 = vpop.permute.xlu0 %1331
        %1365 = vrot.lane.b32.xlu0 %v870, 96
        %v1366 = vpop.permute.xlu0 %1365
        %1367 = vrot.lane.b32.xlu0 %v774, 96
        %v1368 = vpop.permute.xlu0 %1367
        %1369 = vrot.lane.b32.xlu0 %v871, 96
        %v1370 = vpop.permute.xlu0 %1369
        %1371 = vrot.lane.b32.xlu0 %v777, 96
        %v1372 = vpop.permute.xlu0 %1371
        %1373 = vrot.lane.b32.xlu0 %v872, 96
        %v1374 = vpop.permute.xlu0 %1373
        %1375 = vrot.lane.b32.xlu0 %v780, 96
        %v1376 = vpop.permute.xlu0 %1375
        %1377 = vrot.lane.b32.xlu0 %v873, 96
        %v1378 = vpop.permute.xlu0 %1377
        %1379 = vrot.lane.b32.xlu0 %v783, 96
        %v1380 = vpop.permute.xlu0 %1379
        %1381 = vrot.lane.b32.xlu0 %v874, 96
        %v1382 = vpop.permute.xlu0 %1381
        %1383 = vrot.lane.b32.xlu0 %v786, 96
        %v1384 = vpop.permute.xlu0 %1383
        %1385 = vrot.lane.b32.xlu0 %v875, 96
        %v1386 = vpop.permute.xlu0 %1385
        %1387 = vrot.lane.b32.xlu0 %v789, 96
        %v1388 = vpop.permute.xlu0 %1387
        %1389 = vrot.lane.b32.xlu0 %v876, 96
        %v1390 = vpop.permute.xlu0 %1389
        %1391 = vrot.lane.b32.xlu0 %v792, 96
        %v1392 = vpop.permute.xlu0 %1391
        %1393 = vrot.lane.b32.xlu0 %v877, 96
        %v1394 = vpop.permute.xlu0 %1393
        %1395 = vrot.lane.b32.xlu0 %v795, 96
        %v1396 = vpop.permute.xlu0 %1395
        %1397 = vrot.lane.b32.xlu0 %v878, 96
        %v1398 = vpop.permute.xlu0 %1397
        %1399 = vrot.lane.b32.xlu0 %v798, 96
        %v1400 = vpop.permute.xlu0 %1399
        %1401 = vrot.lane.b32.xlu0 %v879, 96
        %v1402 = vpop.permute.xlu0 %1401
        %1403 = vrot.lane.b32.xlu0 %v801, 96
        %v1404 = vpop.permute.xlu0 %1403
        %1405 = vrot.lane.b32.xlu0 %v880, 96
        %v1406 = vpop.permute.xlu0 %1405
        %1407 = vrot.lane.b32.xlu0 %v804, 96
        %v1408 = vpop.permute.xlu0 %1407
        %1409 = vrot.lane.b32.xlu0 %v881, 96
        %v1410 = vpop.permute.xlu0 %1409
        %1411 = vrot.lane.b32.xlu0 %v807, 96
        %v1412 = vpop.permute.xlu0 %1411
        %1413 = vrot.lane.b32.xlu0 %v882, 96
        %v1414 = vpop.permute.xlu0 %1413
        %1415 = vrot.lane.b32.xlu0 %v810, 96
        %v1416 = vpop.permute.xlu0 %1415
        %1417 = vrot.lane.b32.xlu0 %v883, 96
        %v1418 = vpop.permute.xlu0 %1417
        %1419 = vrot.lane.b32.xlu0 %v813, 96
        %v1420 = vpop.permute.xlu0 %1419
        %1421 = vrot.lane.b32.xlu0 %v884, 96
        %v1422 = vpop.permute.xlu0 %1421
        %1423 = vrot.lane.b32.xlu0 %v816, 96
        %v1424 = vpop.permute.xlu0 %1423
        %1425 = vrot.lane.b32.xlu0 %v885, 96
        %v1426 = vpop.permute.xlu0 %1425
        %1427 = vrot.lane.b32.xlu0 %v819, 96
        %v1428 = vpop.permute.xlu0 %1427
        %1461 = vrot.lane.b32.xlu0 %v1024, 32
        %v1462 = vpop.permute.xlu0 %1461
        %1463 = vrot.lane.b32.xlu0 %v1026, 32
        %v1464 = vpop.permute.xlu0 %1463
        %1465 = vrot.lane.b32.xlu0 %v1029, 32
        %v1466 = vpop.permute.xlu0 %1465
        %1467 = vrot.lane.b32.xlu0 %v1031, 32
        %v1468 = vpop.permute.xlu0 %1467
        %1469 = vrot.lane.b32.xlu0 %v1034, 32
        %v1470 = vpop.permute.xlu0 %1469
        %1471 = vrot.lane.b32.xlu0 %v1036, 32
        %v1472 = vpop.permute.xlu0 %1471
        %1473 = vrot.lane.b32.xlu0 %v1039, 32
        %v1474 = vpop.permute.xlu0 %1473
        %1475 = vrot.lane.b32.xlu0 %v1041, 32
        %v1476 = vpop.permute.xlu0 %1475
        %1477 = vrot.lane.b32.xlu0 %v1044, 32
        %v1478 = vpop.permute.xlu0 %1477
        %1479 = vrot.lane.b32.xlu0 %v1046, 32
        %v1480 = vpop.permute.xlu0 %1479
        %1481 = vrot.lane.b32.xlu0 %v1049, 32
        %v1482 = vpop.permute.xlu0 %1481
        %1483 = vrot.lane.b32.xlu0 %v1051, 32
        %v1484 = vpop.permute.xlu0 %1483
        %1485 = vrot.lane.b32.xlu0 %v1054, 32
        %v1486 = vpop.permute.xlu0 %1485
        %1487 = vrot.lane.b32.xlu0 %v1056, 32
        %v1488 = vpop.permute.xlu0 %1487
        %1489 = vrot.lane.b32.xlu0 %v1059, 32
        %v1490 = vpop.permute.xlu0 %1489
        %1491 = vrot.lane.b32.xlu0 %v1061, 32
        %v1492 = vpop.permute.xlu0 %1491
        %1493 = vrot.lane.b32.xlu0 %v1064, 32
        %v1494 = vpop.permute.xlu0 %1493
        %1495 = vrot.lane.b32.xlu0 %v1066, 32
        %v1496 = vpop.permute.xlu0 %1495
        %1497 = vrot.lane.b32.xlu0 %v1069, 32
        %v1498 = vpop.permute.xlu0 %1497
        %1499 = vrot.lane.b32.xlu0 %v1071, 32
        %v1500 = vpop.permute.xlu0 %1499
        %1501 = vrot.lane.b32.xlu0 %v1074, 32
        %v1502 = vpop.permute.xlu0 %1501
        %1503 = vrot.lane.b32.xlu0 %v1076, 32
        %v1504 = vpop.permute.xlu0 %1503
        %1505 = vrot.lane.b32.xlu0 %v1079, 32
        %v1506 = vpop.permute.xlu0 %1505
        %1507 = vrot.lane.b32.xlu0 %v1081, 32
        %v1508 = vpop.permute.xlu0 %1507
        %1509 = vrot.lane.b32.xlu0 %v1084, 32
        %v1510 = vpop.permute.xlu0 %1509
        %1511 = vrot.lane.b32.xlu0 %v1086, 32
        %v1512 = vpop.permute.xlu0 %1511
        %1513 = vrot.lane.b32.xlu0 %v1089, 32
        %v1514 = vpop.permute.xlu0 %1513
        %1515 = vrot.lane.b32.xlu0 %v1091, 32
        %v1516 = vpop.permute.xlu0 %1515
        %1517 = vrot.lane.b32.xlu0 %v1094, 32
        %v1518 = vpop.permute.xlu0 %1517
        %1519 = vrot.lane.b32.xlu0 %v1096, 32
        %v1520 = vpop.permute.xlu0 %1519
        %1521 = vrot.lane.b32.xlu0 %v1138, 32
        %v1522 = vpop.permute.xlu0 %1521
        %1523 = vrot.lane.b32.xlu0 %v1140, 32
        %v1524 = vpop.permute.xlu0 %1523
        %1557 = vrot.lane.b32.xlu0 %v871, 64
        %v1558 = vpop.permute.xlu0 %1557
        %1559 = vrot.lane.b32.xlu0 %v777, 64
        %v1560 = vpop.permute.xlu0 %1559
        %1561 = vrot.lane.b32.xlu0 %v872, 64
        %v1562 = vpop.permute.xlu0 %1561
        %1563 = vrot.lane.b32.xlu0 %v780, 64
        %v1564 = vpop.permute.xlu0 %1563
        %1565 = vrot.lane.b32.xlu0 %v873, 64
        %v1566 = vpop.permute.xlu0 %1565
        %1567 = vrot.lane.b32.xlu0 %v783, 64
        %v1568 = vpop.permute.xlu0 %1567
        %1569 = vrot.lane.b32.xlu0 %v874, 64
        %v1570 = vpop.permute.xlu0 %1569
        %1571 = vrot.lane.b32.xlu0 %v786, 64
        %v1572 = vpop.permute.xlu0 %1571
        %1573 = vrot.lane.b32.xlu0 %v875, 64
        %v1574 = vpop.permute.xlu0 %1573
        %1575 = vrot.lane.b32.xlu0 %v789, 64
        %v1576 = vpop.permute.xlu0 %1575
        %1577 = vrot.lane.b32.xlu0 %v876, 64
        %v1578 = vpop.permute.xlu0 %1577
        %1579 = vrot.lane.b32.xlu0 %v792, 64
        %v1580 = vpop.permute.xlu0 %1579
        %1581 = vrot.lane.b32.xlu0 %v877, 64
        %v1582 = vpop.permute.xlu0 %1581
        %1583 = vrot.lane.b32.xlu0 %v795, 64
        %v1584 = vpop.permute.xlu0 %1583
        %1585 = vrot.lane.b32.xlu0 %v878, 64
        %v1586 = vpop.permute.xlu0 %1585
        %1587 = vrot.lane.b32.xlu0 %v798, 64
        %v1588 = vpop.permute.xlu0 %1587
        %1589 = vrot.lane.b32.xlu0 %v879, 64
        %v1590 = vpop.permute.xlu0 %1589
        %1591 = vrot.lane.b32.xlu0 %v801, 64
        %v1592 = vpop.permute.xlu0 %1591
        %1593 = vrot.lane.b32.xlu0 %v880, 64
        %v1594 = vpop.permute.xlu0 %1593
        %1595 = vrot.lane.b32.xlu0 %v804, 64
        %v1596 = vpop.permute.xlu0 %1595
        %1597 = vrot.lane.b32.xlu0 %v881, 64
        %v1598 = vpop.permute.xlu0 %1597
        %1599 = vrot.lane.b32.xlu0 %v807, 64
        %v1600 = vpop.permute.xlu0 %1599
        %1601 = vrot.lane.b32.xlu0 %v882, 64
        %v1602 = vpop.permute.xlu0 %1601
        %1603 = vrot.lane.b32.xlu0 %v810, 64
        %v1604 = vpop.permute.xlu0 %1603
        %1605 = vrot.lane.b32.xlu0 %v883, 64
        %v1606 = vpop.permute.xlu0 %1605
        %1607 = vrot.lane.b32.xlu0 %v813, 64
        %v1608 = vpop.permute.xlu0 %1607
        %1609 = vrot.lane.b32.xlu0 %v884, 64
        %v1610 = vpop.permute.xlu0 %1609
        %1611 = vrot.lane.b32.xlu0 %v816, 64
        %v1612 = vpop.permute.xlu0 %1611
        %1613 = vrot.lane.b32.xlu0 %v885, 64
        %v1614 = vpop.permute.xlu0 %1613
        %1615 = vrot.lane.b32.xlu0 %v819, 64
        %v1616 = vpop.permute.xlu0 %1615
        %1617 = vrot.lane.b32.xlu0 %v869, 64
        %v1618 = vpop.permute.xlu0 %1617
        %1619 = vrot.lane.b32.xlu0 %v771, 64
        %v1620 = vpop.permute.xlu0 %1619
        %1653 = vrot.lane.b32.xlu0 %v948, 96
        %v1654 = vpop.permute.xlu0 %1653
        %1655 = vrot.lane.b32.xlu0 %v950, 96
        %v1656 = vpop.permute.xlu0 %1655
        %1657 = vrot.lane.b32.xlu0 %v953, 96
        %v1658 = vpop.permute.xlu0 %1657
        %1659 = vrot.lane.b32.xlu0 %v955, 96
        %v1660 = vpop.permute.xlu0 %1659
        %1661 = vrot.lane.b32.xlu0 %v958, 96
        %v1662 = vpop.permute.xlu0 %1661
        %1663 = vrot.lane.b32.xlu0 %v960, 96
        %v1664 = vpop.permute.xlu0 %1663
        %1665 = vrot.lane.b32.xlu0 %v963, 96
        %v1666 = vpop.permute.xlu0 %1665
        %1667 = vrot.lane.b32.xlu0 %v965, 96
        %v1668 = vpop.permute.xlu0 %1667
        %1669 = vrot.lane.b32.xlu0 %v968, 96
        %v1670 = vpop.permute.xlu0 %1669
        %1671 = vrot.lane.b32.xlu0 %v970, 96
        %v1672 = vpop.permute.xlu0 %1671
        %1673 = vrot.lane.b32.xlu0 %v973, 96
        %v1674 = vpop.permute.xlu0 %1673
        %1675 = vrot.lane.b32.xlu0 %v975, 96
        %v1676 = vpop.permute.xlu0 %1675
        %1677 = vrot.lane.b32.xlu0 %v978, 96
        %v1678 = vpop.permute.xlu0 %1677
        %1679 = vrot.lane.b32.xlu0 %v980, 96
        %v1680 = vpop.permute.xlu0 %1679
        %1681 = vrot.lane.b32.xlu0 %v983, 96
        %v1682 = vpop.permute.xlu0 %1681
        %1683 = vrot.lane.b32.xlu0 %v985, 96
        %v1684 = vpop.permute.xlu0 %1683
        %1685 = vrot.lane.b32.xlu0 %v988, 96
        %v1686 = vpop.permute.xlu0 %1685
        %1687 = vrot.lane.b32.xlu0 %v990, 96
        %v1688 = vpop.permute.xlu0 %1687
        %1689 = vrot.lane.b32.xlu0 %v993, 96
        %v1690 = vpop.permute.xlu0 %1689
        %1691 = vrot.lane.b32.xlu0 %v995, 96
        %v1692 = vpop.permute.xlu0 %1691
        %1693 = vrot.lane.b32.xlu0 %v998, 96
        %v1694 = vpop.permute.xlu0 %1693
        %1695 = vrot.lane.b32.xlu0 %v1000, 96
        %v1696 = vpop.permute.xlu0 %1695
        %1697 = vrot.lane.b32.xlu0 %v1003, 96
        %v1698 = vpop.permute.xlu0 %1697
        %1699 = vrot.lane.b32.xlu0 %v1005, 96
        %v1700 = vpop.permute.xlu0 %1699
        %1701 = vrot.lane.b32.xlu0 %v1008, 96
        %v1702 = vpop.permute.xlu0 %1701
        %1703 = vrot.lane.b32.xlu0 %v1010, 96
        %v1704 = vpop.permute.xlu0 %1703
        %1705 = vrot.lane.b32.xlu0 %v1013, 96
        %v1706 = vpop.permute.xlu0 %1705
        %1707 = vrot.lane.b32.xlu0 %v1015, 96
        %v1708 = vpop.permute.xlu0 %1707
        %1709 = vrot.lane.b32.xlu0 %v1101, 96
        %v1710 = vpop.permute.xlu0 %1709
        %1711 = vrot.lane.b32.xlu0 %v1103, 96
        %v1712 = vpop.permute.xlu0 %1711
        %1713 = vrot.lane.b32.xlu0 %v938, 96
        %v1714 = vpop.permute.xlu0 %1713
        %1715 = vrot.lane.b32.xlu0 %v940, 96
        %v1716 = vpop.permute.xlu0 %1715
        %vm1749 = vcmask 261120
        %v1750 = vsel %vm1749, %v869, %v1174
        %v1751 = vsel %vm1749, %v771, %v1176
        %v1752 = vsel %vm1749, %v870, %v1178
        %v1753 = vsel %vm1749, %v774, %v1180
        %v1754 = vsel %vm1749, %v871, %v1182
        %v1755 = vsel %vm1749, %v777, %v1184
        %v1756 = vsel %vm1749, %v872, %v1186
        %v1757 = vsel %vm1749, %v780, %v1188
        %v1758 = vsel %vm1749, %v873, %v1190
        %v1759 = vsel %vm1749, %v783, %v1192
        %v1760 = vsel %vm1749, %v874, %v1194
        %v1761 = vsel %vm1749, %v786, %v1196
        %v1762 = vsel %vm1749, %v875, %v1198
        %v1763 = vsel %vm1749, %v789, %v1200
        %v1764 = vsel %vm1749, %v876, %v1202
        %v1765 = vsel %vm1749, %v792, %v1204
        %v1766 = vsel %vm1749, %v877, %v1206
        %v1767 = vsel %vm1749, %v795, %v1208
        %v1768 = vsel %vm1749, %v878, %v1210
        %v1769 = vsel %vm1749, %v798, %v1212
        %v1770 = vsel %vm1749, %v879, %v1214
        %v1771 = vsel %vm1749, %v801, %v1216
        %v1772 = vsel %vm1749, %v880, %v1218
        %v1773 = vsel %vm1749, %v804, %v1220
        %v1774 = vsel %vm1749, %v881, %v1222
        %v1775 = vsel %vm1749, %v807, %v1224
        %v1776 = vsel %vm1749, %v882, %v1226
        %v1777 = vsel %vm1749, %v810, %v1228
        %v1778 = vsel %vm1749, %v883, %v1230
        %v1779 = vsel %vm1749, %v813, %v1232
        %v1780 = vsel %vm1749, %v884, %v1234
        %v1781 = vsel %vm1749, %v816, %v1236
        %vm1782 = vcmask 523264
        %v1783 = vsel %vm1782, %v1750, %v1270
        %v1784 = vsel %vm1782, %v1751, %v1272
        %v1785 = vsel %vm1782, %v1752, %v1274
        %v1786 = vsel %vm1782, %v1753, %v1276
        %v1787 = vsel %vm1782, %v1754, %v1278
        %v1788 = vsel %vm1782, %v1755, %v1280
        %v1789 = vsel %vm1782, %v1756, %v1282
        %v1790 = vsel %vm1782, %v1757, %v1284
        %v1791 = vsel %vm1782, %v1758, %v1286
        %v1792 = vsel %vm1782, %v1759, %v1288
        %v1793 = vsel %vm1782, %v1760, %v1290
        %v1794 = vsel %vm1782, %v1761, %v1292
        %v1795 = vsel %vm1782, %v1762, %v1294
        %v1796 = vsel %vm1782, %v1763, %v1296
        %v1797 = vsel %vm1782, %v1764, %v1298
        %v1798 = vsel %vm1782, %v1765, %v1300
        %v1799 = vsel %vm1782, %v1766, %v1302
        %v1800 = vsel %vm1782, %v1767, %v1304
        %v1801 = vsel %vm1782, %v1768, %v1306
        %v1802 = vsel %vm1782, %v1769, %v1308
        %v1803 = vsel %vm1782, %v1770, %v1310
        %v1804 = vsel %vm1782, %v1771, %v1312
        %v1805 = vsel %vm1782, %v1772, %v1314
        %v1806 = vsel %vm1782, %v1773, %v1316
        %v1807 = vsel %vm1782, %v1774, %v1318
        %v1808 = vsel %vm1782, %v1775, %v1320
        %v1809 = vsel %vm1782, %v1776, %v1322
        %v1810 = vsel %vm1782, %v1777, %v1324
        %v1811 = vsel %vm1782, %v1778, %v1326
        %v1812 = vsel %vm1782, %v1779, %v1328
        %v1813 = vsel %vm1782, %v1780, %v1330
        %v1814 = vsel %vm1782, %v1781, %v1332
        %vm1815 = vcmask 785408
        %v1816 = vsel %vm1815, %v1783, %v1366
        %v1817 = vsel %vm1815, %v1784, %v1368
        %v1818 = vsel %vm1815, %v1785, %v1370
        %v1819 = vsel %vm1815, %v1786, %v1372
        %v1820 = vsel %vm1815, %v1787, %v1374
        %v1821 = vsel %vm1815, %v1788, %v1376
        %v1822 = vsel %vm1815, %v1789, %v1378
        %v1823 = vsel %vm1815, %v1790, %v1380
        %v1824 = vsel %vm1815, %v1791, %v1382
        %v1825 = vsel %vm1815, %v1792, %v1384
        %v1826 = vsel %vm1815, %v1793, %v1386
        %v1827 = vsel %vm1815, %v1794, %v1388
        %v1828 = vsel %vm1815, %v1795, %v1390
        %v1829 = vsel %vm1815, %v1796, %v1392
        %v1830 = vsel %vm1815, %v1797, %v1394
        %v1831 = vsel %vm1815, %v1798, %v1396
        %v1832 = vsel %vm1815, %v1799, %v1398
        %v1833 = vsel %vm1815, %v1800, %v1400
        %v1834 = vsel %vm1815, %v1801, %v1402
        %v1835 = vsel %vm1815, %v1802, %v1404
        %v1836 = vsel %vm1815, %v1803, %v1406
        %v1837 = vsel %vm1815, %v1804, %v1408
        %v1838 = vsel %vm1815, %v1805, %v1410
        %v1839 = vsel %vm1815, %v1806, %v1412
        %v1840 = vsel %vm1815, %v1807, %v1414
        %v1841 = vsel %vm1815, %v1808, %v1416
        %v1842 = vsel %vm1815, %v1809, %v1418
        %v1843 = vsel %vm1815, %v1810, %v1420
        %v1844 = vsel %vm1815, %v1811, %v1422
        %v1845 = vsel %vm1815, %v1812, %v1424
        %v1846 = vsel %vm1815, %v1813, %v1426
        %v1847 = vsel %vm1815, %v1814, %v1428
        %v1848 = vsel %vm1749, %v943, %v1462
        %v1849 = vsel %vm1749, %v945, %v1464
        %v1850 = vsel %vm1749, %v948, %v1466
        %v1851 = vsel %vm1749, %v950, %v1468
        %v1852 = vsel %vm1749, %v953, %v1470
        %v1853 = vsel %vm1749, %v955, %v1472
        %v1854 = vsel %vm1749, %v958, %v1474
        %v1855 = vsel %vm1749, %v960, %v1476
        %v1856 = vsel %vm1749, %v963, %v1478
        %v1857 = vsel %vm1749, %v965, %v1480
        %v1858 = vsel %vm1749, %v968, %v1482
        %v1859 = vsel %vm1749, %v970, %v1484
        %v1860 = vsel %vm1749, %v973, %v1486
        %v1861 = vsel %vm1749, %v975, %v1488
        %v1862 = vsel %vm1749, %v978, %v1490
        %v1863 = vsel %vm1749, %v980, %v1492
        %v1864 = vsel %vm1749, %v983, %v1494
        %v1865 = vsel %vm1749, %v985, %v1496
        %v1866 = vsel %vm1749, %v988, %v1498
        %v1867 = vsel %vm1749, %v990, %v1500
        %v1868 = vsel %vm1749, %v993, %v1502
        %v1869 = vsel %vm1749, %v995, %v1504
        %v1870 = vsel %vm1749, %v998, %v1506
        %v1871 = vsel %vm1749, %v1000, %v1508
        %v1872 = vsel %vm1749, %v1003, %v1510
        %v1873 = vsel %vm1749, %v1005, %v1512
        %v1874 = vsel %vm1749, %v1008, %v1514
        %v1875 = vsel %vm1749, %v1010, %v1516
        %v1876 = vsel %vm1749, %v1013, %v1518
        %v1877 = vsel %vm1749, %v1015, %v1520
        %v1878 = vsel %vm1749, %v1101, %v1522
        %v1879 = vsel %vm1749, %v1103, %v1524
        %v1880 = vsel %vm1782, %v1848, %v1558
        %v1881 = vsel %vm1782, %v1849, %v1560
        %v1882 = vsel %vm1782, %v1850, %v1562
        %v1883 = vsel %vm1782, %v1851, %v1564
        %v1884 = vsel %vm1782, %v1852, %v1566
        %v1885 = vsel %vm1782, %v1853, %v1568
        %v1886 = vsel %vm1782, %v1854, %v1570
        %v1887 = vsel %vm1782, %v1855, %v1572
        %v1888 = vsel %vm1782, %v1856, %v1574
        %v1889 = vsel %vm1782, %v1857, %v1576
        %v1890 = vsel %vm1782, %v1858, %v1578
        %v1891 = vsel %vm1782, %v1859, %v1580
        %v1892 = vsel %vm1782, %v1860, %v1582
        %v1893 = vsel %vm1782, %v1861, %v1584
        %v1894 = vsel %vm1782, %v1862, %v1586
        %v1895 = vsel %vm1782, %v1863, %v1588
        %v1896 = vsel %vm1782, %v1864, %v1590
        %v1897 = vsel %vm1782, %v1865, %v1592
        %v1898 = vsel %vm1782, %v1866, %v1594
        %v1899 = vsel %vm1782, %v1867, %v1596
        %v1900 = vsel %vm1782, %v1868, %v1598
        %v1901 = vsel %vm1782, %v1869, %v1600
        %v1902 = vsel %vm1782, %v1870, %v1602
        %v1903 = vsel %vm1782, %v1871, %v1604
        %v1904 = vsel %vm1782, %v1872, %v1606
        %v1905 = vsel %vm1782, %v1873, %v1608
        %v1906 = vsel %vm1782, %v1874, %v1610
        %v1907 = vsel %vm1782, %v1875, %v1612
        %v1908 = vsel %vm1782, %v1876, %v1614
        %v1909 = vsel %vm1782, %v1877, %v1616
        %v1910 = vsel %vm1782, %v1878, %v1618
        %v1911 = vsel %vm1782, %v1879, %v1620
        %v1912 = vsel %vm1815, %v1880, %v1654
        %v1913 = vsel %vm1815, %v1881, %v1656
        %v1914 = vsel %vm1815, %v1882, %v1658
        %v1915 = vsel %vm1815, %v1883, %v1660
        %v1916 = vsel %vm1815, %v1884, %v1662
        %v1917 = vsel %vm1815, %v1885, %v1664
        %v1918 = vsel %vm1815, %v1886, %v1666
        %v1919 = vsel %vm1815, %v1887, %v1668
        %v1920 = vsel %vm1815, %v1888, %v1670
        %v1921 = vsel %vm1815, %v1889, %v1672
        %v1922 = vsel %vm1815, %v1890, %v1674
        %v1923 = vsel %vm1815, %v1891, %v1676
        %v1924 = vsel %vm1815, %v1892, %v1678
        %v1925 = vsel %vm1815, %v1893, %v1680
        %v1926 = vsel %vm1815, %v1894, %v1682
        %v1927 = vsel %vm1815, %v1895, %v1684
        %v1928 = vsel %vm1815, %v1896, %v1686
        %v1929 = vsel %vm1815, %v1897, %v1688
        %v1930 = vsel %vm1815, %v1898, %v1690
        %v1931 = vsel %vm1815, %v1899, %v1692
        %v1932 = vsel %vm1815, %v1900, %v1694
        %v1933 = vsel %vm1815, %v1901, %v1696
        %v1934 = vsel %vm1815, %v1902, %v1698
        %v1935 = vsel %vm1815, %v1903, %v1700
        %v1936 = vsel %vm1815, %v1904, %v1702
        %v1937 = vsel %vm1815, %v1905, %v1704
        %v1938 = vsel %vm1815, %v1906, %v1706
        %v1939 = vsel %vm1815, %v1907, %v1708
        %v1940 = vsel %vm1815, %v1908, %v1710
        %v1941 = vsel %vm1815, %v1909, %v1712
        %v1942 = vsel %vm1815, %v1910, %v1714
        %v1943 = vsel %vm1815, %v1911, %v1716
        %v1944 = vpack.c.bf16 %v1817, %v1816
        %v1945 = vpack.c.bf16 %v1913, %v1912
        %v1946 = vpack.c.bf16 %v1031, %v1029
        %v1947 = vpack.c.bf16 %v1819, %v1818
        %v1948 = vpack.c.bf16 %v1915, %v1914
        %v1949 = vpack.c.bf16 %v1036, %v1034
        %v1950 = vpack.c.bf16 %v1821, %v1820
        %v1951 = vpack.c.bf16 %v1917, %v1916
        %v1952 = vpack.c.bf16 %v1041, %v1039
        %v1953 = vpack.c.bf16 %v1823, %v1822
        %v1954 = vpack.c.bf16 %v1919, %v1918
        %v1955 = vpack.c.bf16 %v1046, %v1044
        %v1956 = vpack.c.bf16 %v1825, %v1824
        %v1957 = vpack.c.bf16 %v1921, %v1920
        %v1958 = vpack.c.bf16 %v1051, %v1049
        %v1959 = vpack.c.bf16 %v1827, %v1826
        %v1960 = vpack.c.bf16 %v1923, %v1922
        %v1961 = vpack.c.bf16 %v1056, %v1054
        %v1962 = vpack.c.bf16 %v1829, %v1828
        %v1963 = vpack.c.bf16 %v1925, %v1924
        %v1964 = vpack.c.bf16 %v1061, %v1059
        %v1965 = vpack.c.bf16 %v1831, %v1830
        %v1966 = vpack.c.bf16 %v1927, %v1926
        %v1967 = vpack.c.bf16 %v1066, %v1064
        %v1968 = vpack.c.bf16 %v1833, %v1832
        %v1969 = vpack.c.bf16 %v1929, %v1928
        %v1970 = vpack.c.bf16 %v1071, %v1069
        %v1971 = vpack.c.bf16 %v1835, %v1834
        %v1972 = vpack.c.bf16 %v1931, %v1930
        %v1973 = vpack.c.bf16 %v1076, %v1074
        %v1974 = vpack.c.bf16 %v1837, %v1836
        %v1975 = vpack.c.bf16 %v1933, %v1932
        %v1976 = vpack.c.bf16 %v1081, %v1079
        %v1977 = vpack.c.bf16 %v1839, %v1838
        %v1978 = vpack.c.bf16 %v1935, %v1934
        %v1979 = vpack.c.bf16 %v1086, %v1084
        %v1980 = vpack.c.bf16 %v1841, %v1840
        %v1981 = vpack.c.bf16 %v1937, %v1936
        %v1982 = vpack.c.bf16 %v1091, %v1089
        %v1983 = vpack.c.bf16 %v1843, %v1842
        %v1984 = vpack.c.bf16 %v1939, %v1938
        %v1985 = vpack.c.bf16 %v1096, %v1094
        %v1986 = vpack.c.bf16 %v1845, %v1844
        %v1987 = vpack.c.bf16 %v1941, %v1940
        %v1988 = vpack.c.bf16 %v1140, %v1138
        %v1989 = vpack.c.bf16 %v1847, %v1846
        %v1990 = vpack.c.bf16 %v1943, %v1942
        %v1991 = vpack.c.bf16 %v1021, %v1019
        %v1992 = vld [vmem:[%s3] sm:$0xf]
        %v1993 = vld [vmem:[%s3 + $0x4] sm:$0xf]
        %v1994 = vld [vmem:[%s3 + $0x8] sm:$0xf]
        %v1995 = vld [vmem:[%s3 + $0xc] sm:$0xf]
        %v1996 = vld [vmem:[%s3 + $0x10] sm:$0xf]
        %v1997 = vld [vmem:[%s3 + $0x14] sm:$0xf]
        %v1998 = vld [vmem:[%s3 + $0x18] sm:$0xf]
        %v1999 = vld [vmem:[%s3 + $0x1c] sm:$0xf]
        %v2000 = vld [vmem:[%s3 + $0x20] sm:$0xf]
        %v2001 = vld [vmem:[%s3 + $0x24] sm:$0xf]
        %v2002 = vld [vmem:[%s3 + $0x28] sm:$0xf]
        %v2003 = vld [vmem:[%s3 + $0x2c] sm:$0xf]
        %v2004 = vld [vmem:[%s3 + $0x30] sm:$0xf]
        %v2005 = vld [vmem:[%s3 + $0x34] sm:$0xf]
        %v2006 = vld [vmem:[%s3 + $0x38] sm:$0xf]
        %v2007 = vld [vmem:[%s3 + $0x3c] sm:$0xf]
        %v2008 = vld [vmem:[%s3 + $0x40] sm:$0xf]
        %v2009 = vld [vmem:[%s3 + $0x44] sm:$0xf]
        %v2010 = vld [vmem:[%s3 + $0x48] sm:$0xf]
        %v2011 = vld [vmem:[%s3 + $0x4c] sm:$0xf]
        %v2012 = vld [vmem:[%s3 + $0x50] sm:$0xf]
        %v2013 = vld [vmem:[%s3 + $0x54] sm:$0xf]
        %v2014 = vld [vmem:[%s3 + $0x58] sm:$0xf]
        %v2015 = vld [vmem:[%s3 + $0x5c] sm:$0xf]
        %v2016 = vld [vmem:[%s3 + $0x60] sm:$0xf]
        %v2017 = vld [vmem:[%s3 + $0x64] sm:$0xf]
        %v2018 = vld [vmem:[%s3 + $0x68] sm:$0xf]
        %v2019 = vld [vmem:[%s3 + $0x6c] sm:$0xf]
        %v2020 = vld [vmem:[%s3 + $0x70] sm:$0xf]
        %v2021 = vld [vmem:[%s3 + $0x74] sm:$0xf]
        %v2022 = vld [vmem:[%s3 + $0x78] sm:$0xf]
        %v2023 = vld [vmem:[%s3 + $0x7c] sm:$0xf]
        %v2024 = vld [vmem:[%s3 + $0x80] sm:$0xf]
        %v2025 = vld [vmem:[%s3 + $0x84] sm:$0xf]
        %v2026 = vld [vmem:[%s3 + $0x88] sm:$0xf]
        %v2027 = vld [vmem:[%s3 + $0x8c] sm:$0xf]
        %v2028 = vld [vmem:[%s4] sm:$0x1]
        %v2030 = vlaneseq
        %v2031 = vshrl.u32 %v2030, 7
        %v2032 = vsub.s32 0, %v2031
        %v2033 = vrot.slane %v2028, %v2032
        %v2071 = vunpack.c.l.b16 %v1992
        %v2072 = vunpack.c.l.b16 %v1993
        %v2073 = vunpack.c.l.b16 %v1994
        %v2074 = vunpack.c.l.b16 %v1995
        %v2075 = vunpack.c.l.b16 %v1996
        %v2076 = vunpack.c.l.b16 %v1997
        %v2077 = vunpack.c.l.b16 %v1998
        %v2078 = vunpack.c.l.b16 %v1999
        %v2079 = vunpack.c.l.b16 %v2000
        %v2080 = vunpack.c.l.b16 %v2001
        %v2081 = vunpack.c.l.b16 %v2002
        %v2082 = vunpack.c.l.b16 %v2003
        %v2083 = vunpack.c.l.b16 %v2004
        %v2084 = vunpack.c.l.b16 %v2005
        %v2085 = vunpack.c.l.b16 %v2006
        %v2086 = vunpack.c.l.b16 %v2007
        %v2087 = vunpack.c.l.b16 %v2008
        %v2088 = vunpack.c.l.b16 %v2009
        %v2089 = vunpack.c.l.b16 %v2010
        %v2090 = vunpack.c.l.b16 %v2011
        %v2091 = vunpack.c.l.b16 %v2012
        %v2092 = vunpack.c.l.b16 %v2013
        %v2093 = vunpack.c.l.b16 %v2014
        %v2094 = vunpack.c.l.b16 %v2015
        %v2095 = vunpack.c.l.b16 %v2016
        %v2096 = vunpack.c.l.b16 %v2017
        %v2097 = vunpack.c.l.b16 %v2018
        %v2098 = vunpack.c.l.b16 %v2019
        %v2099 = vunpack.c.l.b16 %v2020
        %v2100 = vunpack.c.l.b16 %v2021
        %v2101 = vunpack.c.l.b16 %v2022
        %v2102 = vunpack.c.l.b16 %v2023
        %v2103 = vunpack.c.l.b16 %v2024
        %v2104 = vunpack.c.l.b16 %v2025
        %v2105 = vunpack.c.l.b16 %v2026
        %v2106 = vunpack.c.l.b16 %v2027
        %v2107 = vpack.c.b16 %v2072, %v2071
        %v2108 = vpack.c.b16 %v2074, %v2073
        %v2109 = vpack.c.b16 %v2076, %v2075
        %v2110 = vpack.c.b16 %v2078, %v2077
        %v2111 = vpack.c.b16 %v2080, %v2079
        %v2112 = vpack.c.b16 %v2082, %v2081
        %v2113 = vpack.c.b16 %v2084, %v2083
        %v2114 = vpack.c.b16 %v2086, %v2085
        %v2115 = vpack.c.b16 %v2088, %v2087
        %v2116 = vpack.c.b16 %v2090, %v2089
        %v2117 = vpack.c.b16 %v2092, %v2091
        %v2118 = vpack.c.b16 %v2094, %v2093
        %v2119 = vpack.c.b16 %v2096, %v2095
        %v2120 = vpack.c.b16 %v2098, %v2097
        %v2121 = vpack.c.b16 %v2100, %v2099
        %v2122 = vpack.c.b16 %v2102, %v2101
        %v2123 = vpack.c.b16 %v2104, %v2103
        %v2124 = vpack.c.b16 %v2106, %v2105
        %v2144 = vsel %vm1749, %v1946, 0
        %v2147 = vsel %vm1749, %v1949, 0
        %v2150 = vsel %vm1749, %v1952, 0
        %v2153 = vsel %vm1749, %v1955, 0
        %v2156 = vsel %vm1749, %v1958, 0
        %v2159 = vsel %vm1749, %v1961, 0
        %v2162 = vsel %vm1749, %v1964, 0
        %v2165 = vsel %vm1749, %v1967, 0
        %v2168 = vsel %vm1749, %v1970, 0
        %v2171 = vsel %vm1749, %v1973, 0
        %v2174 = vsel %vm1749, %v1976, 0
        %v2177 = vsel %vm1749, %v1979, 0
        %v2180 = vsel %vm1749, %v1982, 0
        %v2183 = vsel %vm1749, %v1985, 0
        %v2186 = vsel %vm1749, %v1988, 0
        %v2189 = vsel %vm1749, %v1991, 0
        %2191 = vmatprep.subr.bf16.mxu0 0
        %2192 = vmatpush1.bf16.msra.mxu0 %v2107
        %2193 = vmatprep.subr.bf16.mxu0 0
        %2194 = vmatpush1.bf16.msra.mxu0 %v2108
        %2195 = vmatprep.subr.bf16.mxu0 0
        %2196 = vmatpush1.bf16.msra.mxu0 %v2109
        %2197 = vmatprep.subr.bf16.mxu0 0
        %2198 = vmatpush1.bf16.msra.mxu0 %v2110
        %2199 = vmatprep.subr.bf16.mxu0 0
        %2200 = vmatpush1.bf16.msra.mxu0 %v2111
        %2201 = vmatprep.subr.bf16.mxu0 0
        %2202 = vmatpush1.bf16.msra.mxu0 %v2112
        %2203 = vmatprep.subr.bf16.mxu0 0
        %2204 = vmatpush1.bf16.msra.mxu0 %v2113
        %2205 = vmatprep.subr.bf16.mxu0 0
        %2206 = vmatpush1.bf16.msra.mxu0 %v2114
        %2207 = vmatprep.subr.bf16.mxu0 0
        %2208 = vmatpush1.bf16.msra.mxu0 %v2115
        %2209 = vmatprep.subr.bf16.mxu0 0
        %2210 = vmatpush1.bf16.msra.mxu0 %v2116
        %2211 = vmatprep.subr.bf16.mxu0 0
        %2212 = vmatpush1.bf16.msra.mxu0 %v2117
        %2213 = vmatprep.subr.bf16.mxu0 0
        %2214 = vmatpush1.bf16.msra.mxu0 %v2118
        %2215 = vmatprep.subr.bf16.mxu0 0
        %2216 = vmatpush1.bf16.msra.mxu0 %v2119
        %2217 = vmatprep.subr.bf16.mxu0 0
        %2218 = vmatpush1.bf16.msra.mxu0 %v2120
        %2219 = vmatprep.subr.bf16.mxu0 0
        %2220 = vmatpush1.bf16.msra.mxu0 %v2121
        %2221 = vmatprep.subr.bf16.mxu0 0
        %2222 = vmatpush1.bf16.msra.mxu0 %v2122
        %2223 = vmatprep.mubr.bf16.mxu0 %v1945
        %2224 = vmatmul.mubr.bf16.gmra.mrb[0].mxu0 %v1944
        %v2225 = vpop.f32.mrb[0].mxu0
        %v2226 = vadd.f32 %v2033, %v2225
        %v2227 = vpop.f32.mrb[0].mxu0
        %v2228 = vpop.f32.mrb[0].mxu0
        %v2229 = vadd.f32 %v2033, %v2228
        %v2230 = vpop.f32.mrb[0].mxu0
        %2231 = vmatprep.mubr.bf16.mxu0 %v1948
        %2232 = vmatmul.mubr.bf16.gmra.mrb[0].mxu0 %v1947
        %v2233 = vpop.f32.mrb[0].mxu0
        %v2234 = vadd.f32 %v2033, %v2233
        %v2235 = vpop.f32.mrb[0].mxu0
        %v2236 = vpop.f32.mrb[0].mxu0
        %v2237 = vadd.f32 %v2033, %v2236
        %v2238 = vpop.f32.mrb[0].mxu0
        %2239 = vmatprep.mubr.bf16.mxu0 %v1951
        %2240 = vmatmul.mubr.bf16.gmra.mrb[0].mxu0 %v1950
        %v2241 = vpop.f32.mrb[0].mxu0
        %v2242 = vadd.f32 %v2033, %v2241
        %v2243 = vpop.f32.mrb[0].mxu0
        %v2244 = vpop.f32.mrb[0].mxu0
        %v2245 = vadd.f32 %v2033, %v2244
        %v2246 = vpop.f32.mrb[0].mxu0
        %2247 = vmatprep.mubr.bf16.mxu0 %v1954
        %2248 = vmatmul.mubr.bf16.gmra.mrb[0].mxu0 %v1953
        %v2249 = vpop.f32.mrb[0].mxu0
        %v2250 = vadd.f32 %v2033, %v2249
        %v2251 = vpop.f32.mrb[0].mxu0
        %v2252 = vpop.f32.mrb[0].mxu0
        %v2253 = vadd.f32 %v2033, %v2252
        %v2254 = vpop.f32.mrb[0].mxu0
        %2255 = vmatprep.mubr.bf16.mxu0 %v1957
        %2256 = vmatmul.mubr.bf16.gmra.mrb[0].mxu0 %v1956
        %v2257 = vpop.f32.mrb[0].mxu0
        %v2258 = vadd.f32 %v2033, %v2257
        %v2259 = vpop.f32.mrb[0].mxu0
        %v2260 = vpop.f32.mrb[0].mxu0
        %v2261 = vadd.f32 %v2033, %v2260
        %v2262 = vpop.f32.mrb[0].mxu0
        %2263 = vmatprep.mubr.bf16.mxu0 %v1960
        %2264 = vmatmul.mubr.bf16.gmra.mrb[0].mxu0 %v1959
        %v2265 = vpop.f32.mrb[0].mxu0
        %v2266 = vadd.f32 %v2033, %v2265
        %v2267 = vpop.f32.mrb[0].mxu0
        %v2268 = vpop.f32.mrb[0].mxu0
        %v2269 = vadd.f32 %v2033, %v2268
        %v2270 = vpop.f32.mrb[0].mxu0
        %2271 = vmatprep.mubr.bf16.mxu0 %v1963
        %2272 = vmatmul.mubr.bf16.gmra.mrb[0].mxu0 %v1962
        %v2273 = vpop.f32.mrb[0].mxu0
        %v2274 = vadd.f32 %v2033, %v2273
        %v2275 = vpop.f32.mrb[0].mxu0
        %v2276 = vpop.f32.mrb[0].mxu0
        %v2277 = vadd.f32 %v2033, %v2276
        %v2278 = vpop.f32.mrb[0].mxu0
        %2279 = vmatprep.mubr.bf16.mxu0 %v1966
        %2280 = vmatmul.mubr.bf16.gmra.mrb[0].mxu0 %v1965
        %v2281 = vpop.f32.mrb[0].mxu0
        %v2282 = vadd.f32 %v2033, %v2281
        %v2283 = vpop.f32.mrb[0].mxu0
        %v2284 = vpop.f32.mrb[0].mxu0
        %v2285 = vadd.f32 %v2033, %v2284
        %v2286 = vpop.f32.mrb[0].mxu0
        %2287 = vmatprep.mubr.bf16.mxu0 %v1969
        %2288 = vmatmul.mubr.bf16.gmra.mrb[0].mxu0 %v1968
        %v2289 = vpop.f32.mrb[0].mxu0
        %v2290 = vadd.f32 %v2033, %v2289
        %v2291 = vpop.f32.mrb[0].mxu0
        %v2292 = vpop.f32.mrb[0].mxu0
        %v2293 = vadd.f32 %v2033, %v2292
        %v2294 = vpop.f32.mrb[0].mxu0
        %2295 = vmatprep.mubr.bf16.mxu0 %v1972
        %2296 = vmatmul.mubr.bf16.gmra.mrb[0].mxu0 %v1971
        %v2297 = vpop.f32.mrb[0].mxu0
        %v2298 = vadd.f32 %v2033, %v2297
        %v2299 = vpop.f32.mrb[0].mxu0
        %v2300 = vpop.f32.mrb[0].mxu0
        %v2301 = vadd.f32 %v2033, %v2300
        %v2302 = vpop.f32.mrb[0].mxu0
        %2303 = vmatprep.mubr.bf16.mxu0 %v1975
        %2304 = vmatmul.mubr.bf16.gmra.mrb[0].mxu0 %v1974
        %v2305 = vpop.f32.mrb[0].mxu0
        %v2306 = vadd.f32 %v2033, %v2305
        %v2307 = vpop.f32.mrb[0].mxu0
        %v2308 = vpop.f32.mrb[0].mxu0
        %v2309 = vadd.f32 %v2033, %v2308
        %v2310 = vpop.f32.mrb[0].mxu0
        %2311 = vmatprep.mubr.bf16.mxu0 %v1978
        %2312 = vmatmul.mubr.bf16.gmra.mrb[0].mxu0 %v1977
        %v2313 = vpop.f32.mrb[0].mxu0
        %v2314 = vadd.f32 %v2033, %v2313
        %v2315 = vpop.f32.mrb[0].mxu0
        %v2316 = vpop.f32.mrb[0].mxu0
        %v2317 = vadd.f32 %v2033, %v2316
        %v2318 = vpop.f32.mrb[0].mxu0
        %2319 = vmatprep.mubr.bf16.mxu0 %v1981
        %2320 = vmatmul.mubr.bf16.gmra.mrb[0].mxu0 %v1980
        %v2321 = vpop.f32.mrb[0].mxu0
        %v2322 = vadd.f32 %v2033, %v2321
        %v2323 = vpop.f32.mrb[0].mxu0
        %v2324 = vpop.f32.mrb[0].mxu0
        %v2325 = vadd.f32 %v2033, %v2324
        %v2326 = vpop.f32.mrb[0].mxu0
        %2327 = vmatprep.mubr.bf16.mxu0 %v1984
        %2328 = vmatmul.mubr.bf16.gmra.mrb[0].mxu0 %v1983
        %v2329 = vpop.f32.mrb[0].mxu0
        %v2330 = vadd.f32 %v2033, %v2329
        %v2331 = vpop.f32.mrb[0].mxu0
        %v2332 = vpop.f32.mrb[0].mxu0
        %v2333 = vadd.f32 %v2033, %v2332
        %v2334 = vpop.f32.mrb[0].mxu0
        %2335 = vmatprep.mubr.bf16.mxu0 %v1987
        %2336 = vmatmul.mubr.bf16.gmra.mrb[0].mxu0 %v1986
        %v2337 = vpop.f32.mrb[0].mxu0
        %v2338 = vadd.f32 %v2033, %v2337
        %v2339 = vpop.f32.mrb[0].mxu0
        %v2340 = vpop.f32.mrb[0].mxu0
        %v2341 = vadd.f32 %v2033, %v2340
        %v2342 = vpop.f32.mrb[0].mxu0
        %2343 = vmatprep.mubr.bf16.mxu0 %v1990
        %2344 = vmatmul.mubr.bf16.gmra.mrb[0].mxu0 %v1989
        %v2345 = vpop.f32.mrb[0].mxu0
        %v2346 = vadd.f32 %v2033, %v2345
        %v2347 = vpop.f32.mrb[0].mxu0
        %v2348 = vpop.f32.mrb[0].mxu0
        %v2349 = vadd.f32 %v2033, %v2348
        %v2350 = vpop.f32.mrb[0].mxu0
        %2351 = vdwg.mxu0
        %2352 = vmatprep.subr.bf16.mxu0 0
        %2353 = vmatpush1.bf16.msra.mxu0 %v2123
        %2354 = vmatprep.subr.bf16.mxu0 0
        %2355 = vmatpush1.bf16.msra.mxu0 %v2124
        %2356 = vmatprep.subr.bf16.mxu0 0
        %2357 = vmatpush1.bf16.msra.mxu0 0
        %2358 = vmatprep.subr.bf16.mxu0 0
        %2359 = vmatpush1.bf16.msra.mxu0 0
        %2360 = vmatprep.subr.bf16.mxu0 0
        %2361 = vmatpush1.bf16.msra.mxu0 0
        %2362 = vmatprep.subr.bf16.mxu0 0
        %2363 = vmatpush1.bf16.msra.mxu0 0
        %2364 = vmatprep.subr.bf16.mxu0 0
        %2365 = vmatpush1.bf16.msra.mxu0 0
        %2366 = vmatprep.subr.bf16.mxu0 0
        %2367 = vmatpush1.bf16.msra.mxu0 0
        %2368 = vmatprep.subr.bf16.mxu0 0
        %2369 = vmatpush1.bf16.msra.mxu0 0
        %2370 = vmatprep.subr.bf16.mxu0 0
        %2371 = vmatpush1.bf16.msra.mxu0 0
        %2372 = vmatprep.subr.bf16.mxu0 0
        %2373 = vmatpush1.bf16.msra.mxu0 0
        %2374 = vmatprep.subr.bf16.mxu0 0
        %2375 = vmatpush1.bf16.msra.mxu0 0
        %2376 = vmatprep.subr.bf16.mxu0 0
        %2377 = vmatpush1.bf16.msra.mxu0 0
        %2378 = vmatprep.subr.bf16.mxu0 0
        %2379 = vmatpush1.bf16.msra.mxu0 0
        %2380 = vmatprep.subr.bf16.mxu0 0
        %2381 = vmatpush1.bf16.msra.mxu0 0
        %2382 = vmatprep.subr.bf16.mxu0 0
        %2383 = vmatpush1.bf16.msra.mxu0 0
        %2384 = vmatprep.mubr.bf16.mxu0 0
        %2385 = vmatmul.mubr.bf16.gmra.mrb[0].mxu0 %v2144
        %v2386 = vpop.f32.mrb[0].mxu0
        %v2387 = vadd.f32 %v2226, %v2386
        %v2388 = vpop.f32.mrb[0].mxu0
        %v2389 = vpop.f32.mrb[0].mxu0
        %v2390 = vadd.f32 %v2229, %v2389
        %v2391 = vpop.f32.mrb[0].mxu0
        %2392 = vmatprep.mubr.bf16.mxu0 0
        %2393 = vmatmul.mubr.bf16.gmra.mrb[0].mxu0 %v2147
        %v2394 = vpop.f32.mrb[0].mxu0
        %v2395 = vadd.f32 %v2234, %v2394
        %v2396 = vpop.f32.mrb[0].mxu0
        %v2397 = vpop.f32.mrb[0].mxu0
        %v2398 = vadd.f32 %v2237, %v2397
        %v2399 = vpop.f32.mrb[0].mxu0
        %2400 = vmatprep.mubr.bf16.mxu0 0
        %2401 = vmatmul.mubr.bf16.gmra.mrb[0].mxu0 %v2150
        %v2402 = vpop.f32.mrb[0].mxu0
        %v2403 = vadd.f32 %v2242, %v2402
        %v2404 = vpop.f32.mrb[0].mxu0
        %v2405 = vpop.f32.mrb[0].mxu0
        %v2406 = vadd.f32 %v2245, %v2405
        %v2407 = vpop.f32.mrb[0].mxu0
        %2408 = vmatprep.mubr.bf16.mxu0 0
        %2409 = vmatmul.mubr.bf16.gmra.mrb[0].mxu0 %v2153
        %v2410 = vpop.f32.mrb[0].mxu0
        %v2411 = vadd.f32 %v2250, %v2410
        %v2412 = vpop.f32.mrb[0].mxu0
        %v2413 = vpop.f32.mrb[0].mxu0
        %v2414 = vadd.f32 %v2253, %v2413
        %v2415 = vpop.f32.mrb[0].mxu0
        %2416 = vmatprep.mubr.bf16.mxu0 0
        %2417 = vmatmul.mubr.bf16.gmra.mrb[0].mxu0 %v2156
        %v2418 = vpop.f32.mrb[0].mxu0
        %v2419 = vadd.f32 %v2258, %v2418
        %v2420 = vpop.f32.mrb[0].mxu0
        %v2421 = vpop.f32.mrb[0].mxu0
        %v2422 = vadd.f32 %v2261, %v2421
        %v2423 = vpop.f32.mrb[0].mxu0
        %2424 = vmatprep.mubr.bf16.mxu0 0
        %2425 = vmatmul.mubr.bf16.gmra.mrb[0].mxu0 %v2159
        %v2426 = vpop.f32.mrb[0].mxu0
        %v2427 = vadd.f32 %v2266, %v2426
        %v2428 = vpop.f32.mrb[0].mxu0
        %v2429 = vpop.f32.mrb[0].mxu0
        %v2430 = vadd.f32 %v2269, %v2429
        %v2431 = vpop.f32.mrb[0].mxu0
        %2432 = vmatprep.mubr.bf16.mxu0 0
        %2433 = vmatmul.mubr.bf16.gmra.mrb[0].mxu0 %v2162
        %v2434 = vpop.f32.mrb[0].mxu0
        %v2435 = vadd.f32 %v2274, %v2434
        %v2436 = vpop.f32.mrb[0].mxu0
        %v2437 = vpop.f32.mrb[0].mxu0
        %v2438 = vadd.f32 %v2277, %v2437
        %v2439 = vpop.f32.mrb[0].mxu0
        %2440 = vmatprep.mubr.bf16.mxu0 0
        %2441 = vmatmul.mubr.bf16.gmra.mrb[0].mxu0 %v2165
        %v2442 = vpop.f32.mrb[0].mxu0
        %v2443 = vadd.f32 %v2282, %v2442
        %v2444 = vpop.f32.mrb[0].mxu0
        %v2445 = vpop.f32.mrb[0].mxu0
        %v2446 = vadd.f32 %v2285, %v2445
        %v2447 = vpop.f32.mrb[0].mxu0
        %2448 = vmatprep.mubr.bf16.mxu0 0
        %2449 = vmatmul.mubr.bf16.gmra.mrb[0].mxu0 %v2168
        %v2450 = vpop.f32.mrb[0].mxu0
        %v2451 = vadd.f32 %v2290, %v2450
        %v2452 = vpop.f32.mrb[0].mxu0
        %v2453 = vpop.f32.mrb[0].mxu0
        %v2454 = vadd.f32 %v2293, %v2453
        %v2455 = vpop.f32.mrb[0].mxu0
        %2456 = vmatprep.mubr.bf16.mxu0 0
        %2457 = vmatmul.mubr.bf16.gmra.mrb[0].mxu0 %v2171
        %v2458 = vpop.f32.mrb[0].mxu0
        %v2459 = vadd.f32 %v2298, %v2458
        %v2460 = vpop.f32.mrb[0].mxu0
        %v2461 = vpop.f32.mrb[0].mxu0
        %v2462 = vadd.f32 %v2301, %v2461
        %v2463 = vpop.f32.mrb[0].mxu0
        %2464 = vmatprep.mubr.bf16.mxu0 0
        %2465 = vmatmul.mubr.bf16.gmra.mrb[0].mxu0 %v2174
        %v2466 = vpop.f32.mrb[0].mxu0
        %v2467 = vadd.f32 %v2306, %v2466
        %v2468 = vpop.f32.mrb[0].mxu0
        %v2469 = vpop.f32.mrb[0].mxu0
        %v2470 = vadd.f32 %v2309, %v2469
        %v2471 = vpop.f32.mrb[0].mxu0
        %2472 = vmatprep.mubr.bf16.mxu0 0
        %2473 = vmatmul.mubr.bf16.gmra.mrb[0].mxu0 %v2177
        %v2474 = vpop.f32.mrb[0].mxu0
        %v2475 = vadd.f32 %v2314, %v2474
        %v2476 = vpop.f32.mrb[0].mxu0
        %v2477 = vpop.f32.mrb[0].mxu0
        %v2478 = vadd.f32 %v2317, %v2477
        %v2479 = vpop.f32.mrb[0].mxu0
        %2480 = vmatprep.mubr.bf16.mxu0 0
        %2481 = vmatmul.mubr.bf16.gmra.mrb[0].mxu0 %v2180
        %v2482 = vpop.f32.mrb[0].mxu0
        %v2483 = vadd.f32 %v2322, %v2482
        %v2484 = vpop.f32.mrb[0].mxu0
        %v2485 = vpop.f32.mrb[0].mxu0
        %v2486 = vadd.f32 %v2325, %v2485
        %v2487 = vpop.f32.mrb[0].mxu0
        %2488 = vmatprep.mubr.bf16.mxu0 0
        %2489 = vmatmul.mubr.bf16.gmra.mrb[0].mxu0 %v2183
        %v2490 = vpop.f32.mrb[0].mxu0
        %v2491 = vadd.f32 %v2330, %v2490
        %v2492 = vpop.f32.mrb[0].mxu0
        %v2493 = vpop.f32.mrb[0].mxu0
        %v2494 = vadd.f32 %v2333, %v2493
        %v2495 = vpop.f32.mrb[0].mxu0
        %2496 = vmatprep.mubr.bf16.mxu0 0
        %2497 = vmatmul.mubr.bf16.gmra.mrb[0].mxu0 %v2186
        %v2498 = vpop.f32.mrb[0].mxu0
        %v2499 = vadd.f32 %v2338, %v2498
        %v2500 = vpop.f32.mrb[0].mxu0
        %v2501 = vpop.f32.mrb[0].mxu0
        %v2502 = vadd.f32 %v2341, %v2501
        %v2503 = vpop.f32.mrb[0].mxu0
        %2504 = vmatprep.mubr.bf16.mxu0 0
        %2505 = vmatmul.mubr.bf16.gmra.mrb[0].mxu0 %v2189
        %v2506 = vpop.f32.mrb[0].mxu0
        %v2507 = vadd.f32 %v2346, %v2506
        %v2508 = vpop.f32.mrb[0].mxu0
        %v2509 = vpop.f32.mrb[0].mxu0
        %v2510 = vadd.f32 %v2349, %v2509
        %v2511 = vpop.f32.mrb[0].mxu0
        %2512 = vdwg.mxu0
        %v2513 = vmax.f32 %v2387, 0.0
        %v2514 = vmax.f32 %v2390, 0.0
        %v2515 = vmax.f32 %v2395, 0.0
        %v2516 = vmax.f32 %v2398, 0.0
        %v2517 = vmax.f32 %v2403, 0.0
        %v2518 = vmax.f32 %v2406, 0.0
        %v2519 = vmax.f32 %v2411, 0.0
        %v2520 = vmax.f32 %v2414, 0.0
        %v2521 = vmax.f32 %v2419, 0.0
        %v2522 = vmax.f32 %v2422, 0.0
        %v2523 = vmax.f32 %v2427, 0.0
        %v2524 = vmax.f32 %v2430, 0.0
        %v2525 = vmax.f32 %v2435, 0.0
        %v2526 = vmax.f32 %v2438, 0.0
        %v2527 = vmax.f32 %v2443, 0.0
        %v2528 = vmax.f32 %v2446, 0.0
        %v2529 = vmax.f32 %v2451, 0.0
        %v2530 = vmax.f32 %v2454, 0.0
        %v2531 = vmax.f32 %v2459, 0.0
        %v2532 = vmax.f32 %v2462, 0.0
        %v2533 = vmax.f32 %v2467, 0.0
        %v2534 = vmax.f32 %v2470, 0.0
        %v2535 = vmax.f32 %v2475, 0.0
        %v2536 = vmax.f32 %v2478, 0.0
        %v2537 = vmax.f32 %v2483, 0.0
        %v2538 = vmax.f32 %v2486, 0.0
        %v2539 = vmax.f32 %v2491, 0.0
        %v2540 = vmax.f32 %v2494, 0.0
        %v2541 = vmax.f32 %v2499, 0.0
        %v2542 = vmax.f32 %v2502, 0.0
        %v2543 = vmax.f32 %v2507, 0.0
        %v2544 = vmax.f32 %v2510, 0.0
        %v2545 = vpack.c.bf16 %v2514, %v2513
        %v2546 = vpack.c.bf16 %v2516, %v2515
        %v2547 = vpack.c.bf16 %v2518, %v2517
        %v2548 = vpack.c.bf16 %v2520, %v2519
        %v2549 = vpack.c.bf16 %v2522, %v2521
        %v2550 = vpack.c.bf16 %v2524, %v2523
        %v2551 = vpack.c.bf16 %v2526, %v2525
        %v2552 = vpack.c.bf16 %v2528, %v2527
        %v2553 = vpack.c.bf16 %v2530, %v2529
        %v2554 = vpack.c.bf16 %v2532, %v2531
        %v2555 = vpack.c.bf16 %v2534, %v2533
        %v2556 = vpack.c.bf16 %v2536, %v2535
        %v2557 = vpack.c.bf16 %v2538, %v2537
        %v2558 = vpack.c.bf16 %v2540, %v2539
        %v2559 = vpack.c.bf16 %v2542, %v2541
        %v2560 = vpack.c.bf16 %v2544, %v2543
        %v2561 = vld [vmem:[%s5] sm:$0xf]
        %v2562 = vld [vmem:[%s5 + $0x4] sm:$0xf]
        %v2563 = vld [vmem:[%s5 + $0x8] sm:$0xf]
        %v2564 = vld [vmem:[%s5 + $0xc] sm:$0xf]
        %v2565 = vld [vmem:[%s6] sm:$0x1]
        %v2567 = vlaneseq
        %v2568 = vshrl.u32 %v2567, 7
        %v2569 = vsub.s32 0, %v2568
        %v2570 = vrot.slane %v2565, %v2569
        %v2576 = vunpack.c.l.b16 %v2561
        %v2577 = vunpack.c.l.b16 %v2562
        %v2578 = vunpack.c.l.b16 %v2563
        %v2579 = vunpack.c.l.b16 %v2564
        %v2580 = vpack.c.b16 %v2577, %v2576
        %v2581 = vpack.c.b16 %v2579, %v2578
        %v2585 = vsel %vm1749, %v2545, 0
        %v2588 = vsel %vm1749, %v2546, 0
        %v2591 = vsel %vm1749, %v2547, 0
        %v2594 = vsel %vm1749, %v2548, 0
        %v2597 = vsel %vm1749, %v2549, 0
        %v2600 = vsel %vm1749, %v2550, 0
        %v2603 = vsel %vm1749, %v2551, 0
        %v2606 = vsel %vm1749, %v2552, 0
        %v2609 = vsel %vm1749, %v2553, 0
        %v2612 = vsel %vm1749, %v2554, 0
        %v2615 = vsel %vm1749, %v2555, 0
        %v2618 = vsel %vm1749, %v2556, 0
        %v2621 = vsel %vm1749, %v2557, 0
        %v2624 = vsel %vm1749, %v2558, 0
        %v2627 = vsel %vm1749, %v2559, 0
        %v2630 = vsel %vm1749, %v2560, 0
        %2632 = vmatprep.subr.bf16.mxu0 0
        %2633 = vmatpush1.bf16.msra.mxu0 %v2580
        %2634 = vmatprep.subr.bf16.mxu0 0
        %2635 = vmatpush1.bf16.msra.mxu0 %v2581
        %2636 = vmatprep.subr.bf16.mxu0 0
        %2637 = vmatpush1.bf16.msra.mxu0 0
        %2638 = vmatprep.subr.bf16.mxu0 0
        %2639 = vmatpush1.bf16.msra.mxu0 0
        %2640 = vmatprep.subr.bf16.mxu0 0
        %2641 = vmatpush1.bf16.msra.mxu0 0
        %2642 = vmatprep.subr.bf16.mxu0 0
        %2643 = vmatpush1.bf16.msra.mxu0 0
        %2644 = vmatprep.subr.bf16.mxu0 0
        %2645 = vmatpush1.bf16.msra.mxu0 0
        %2646 = vmatprep.subr.bf16.mxu0 0
        %2647 = vmatpush1.bf16.msra.mxu0 0
        %2648 = vmatprep.subr.bf16.mxu0 0
        %2649 = vmatpush1.bf16.msra.mxu0 0
        %2650 = vmatprep.subr.bf16.mxu0 0
        %2651 = vmatpush1.bf16.msra.mxu0 0
        %2652 = vmatprep.subr.bf16.mxu0 0
        %2653 = vmatpush1.bf16.msra.mxu0 0
        %2654 = vmatprep.subr.bf16.mxu0 0
        %2655 = vmatpush1.bf16.msra.mxu0 0
        %2656 = vmatprep.subr.bf16.mxu0 0
        %2657 = vmatpush1.bf16.msra.mxu0 0
        %2658 = vmatprep.subr.bf16.mxu0 0
        %2659 = vmatpush1.bf16.msra.mxu0 0
        %2660 = vmatprep.subr.bf16.mxu0 0
        %2661 = vmatpush1.bf16.msra.mxu0 0
        %2662 = vmatprep.subr.bf16.mxu0 0
        %2663 = vmatpush1.bf16.msra.mxu0 0
        %2664 = vmatprep.mubr.bf16.mxu0 0
        %2665 = vmatmul.mubr.bf16.gmra.mrb[0].mxu0 %v2585
        %v2666 = vpop.f32.mrb[0].mxu0
        %v2667 = vadd.f32 %v2570, %v2666
        %v2668 = vpop.f32.mrb[0].mxu0
        %v2669 = vpop.f32.mrb[0].mxu0
        %v2670 = vadd.f32 %v2570, %v2669
        %v2671 = vpop.f32.mrb[0].mxu0
        %2672 = vmatprep.mubr.bf16.mxu0 0
        %2673 = vmatmul.mubr.bf16.gmra.mrb[0].mxu0 %v2588
        %v2674 = vpop.f32.mrb[0].mxu0
        %v2675 = vadd.f32 %v2570, %v2674
        %v2676 = vpop.f32.mrb[0].mxu0
        %v2677 = vpop.f32.mrb[0].mxu0
        %v2678 = vadd.f32 %v2570, %v2677
        %v2679 = vpop.f32.mrb[0].mxu0
        %2680 = vmatprep.mubr.bf16.mxu0 0
        %2681 = vmatmul.mubr.bf16.gmra.mrb[0].mxu0 %v2591
        %v2682 = vpop.f32.mrb[0].mxu0
        %v2683 = vadd.f32 %v2570, %v2682
        %v2684 = vpop.f32.mrb[0].mxu0
        %v2685 = vpop.f32.mrb[0].mxu0
        %v2686 = vadd.f32 %v2570, %v2685
        %v2687 = vpop.f32.mrb[0].mxu0
        %2688 = vmatprep.mubr.bf16.mxu0 0
        %2689 = vmatmul.mubr.bf16.gmra.mrb[0].mxu0 %v2594
        %v2690 = vpop.f32.mrb[0].mxu0
        %v2691 = vadd.f32 %v2570, %v2690
        %v2692 = vpop.f32.mrb[0].mxu0
        %v2693 = vpop.f32.mrb[0].mxu0
        %v2694 = vadd.f32 %v2570, %v2693
        %v2695 = vpop.f32.mrb[0].mxu0
        %2696 = vmatprep.mubr.bf16.mxu0 0
        %2697 = vmatmul.mubr.bf16.gmra.mrb[0].mxu0 %v2597
        %v2698 = vpop.f32.mrb[0].mxu0
        %v2699 = vadd.f32 %v2570, %v2698
        %v2700 = vpop.f32.mrb[0].mxu0
        %v2701 = vpop.f32.mrb[0].mxu0
        %v2702 = vadd.f32 %v2570, %v2701
        %v2703 = vpop.f32.mrb[0].mxu0
        %2704 = vmatprep.mubr.bf16.mxu0 0
        %2705 = vmatmul.mubr.bf16.gmra.mrb[0].mxu0 %v2600
        %v2706 = vpop.f32.mrb[0].mxu0
        %v2707 = vadd.f32 %v2570, %v2706
        %v2708 = vpop.f32.mrb[0].mxu0
        %v2709 = vpop.f32.mrb[0].mxu0
        %v2710 = vadd.f32 %v2570, %v2709
        %v2711 = vpop.f32.mrb[0].mxu0
        %2712 = vmatprep.mubr.bf16.mxu0 0
        %2713 = vmatmul.mubr.bf16.gmra.mrb[0].mxu0 %v2603
        %v2714 = vpop.f32.mrb[0].mxu0
        %v2715 = vadd.f32 %v2570, %v2714
        %v2716 = vpop.f32.mrb[0].mxu0
        %v2717 = vpop.f32.mrb[0].mxu0
        %v2718 = vadd.f32 %v2570, %v2717
        %v2719 = vpop.f32.mrb[0].mxu0
        %2720 = vmatprep.mubr.bf16.mxu0 0
        %2721 = vmatmul.mubr.bf16.gmra.mrb[0].mxu0 %v2606
        %v2722 = vpop.f32.mrb[0].mxu0
        %v2723 = vadd.f32 %v2570, %v2722
        %v2724 = vpop.f32.mrb[0].mxu0
        %v2725 = vpop.f32.mrb[0].mxu0
        %v2726 = vadd.f32 %v2570, %v2725
        %v2727 = vpop.f32.mrb[0].mxu0
        %2728 = vmatprep.mubr.bf16.mxu0 0
        %2729 = vmatmul.mubr.bf16.gmra.mrb[0].mxu0 %v2609
        %v2730 = vpop.f32.mrb[0].mxu0
        %v2731 = vadd.f32 %v2570, %v2730
        %v2732 = vpop.f32.mrb[0].mxu0
        %v2733 = vpop.f32.mrb[0].mxu0
        %v2734 = vadd.f32 %v2570, %v2733
        %v2735 = vpop.f32.mrb[0].mxu0
        %2736 = vmatprep.mubr.bf16.mxu0 0
        %2737 = vmatmul.mubr.bf16.gmra.mrb[0].mxu0 %v2612
        %v2738 = vpop.f32.mrb[0].mxu0
        %v2739 = vadd.f32 %v2570, %v2738
        %v2740 = vpop.f32.mrb[0].mxu0
        %v2741 = vpop.f32.mrb[0].mxu0
        %v2742 = vadd.f32 %v2570, %v2741
        %v2743 = vpop.f32.mrb[0].mxu0
        %2744 = vmatprep.mubr.bf16.mxu0 0
        %2745 = vmatmul.mubr.bf16.gmra.mrb[0].mxu0 %v2615
        %v2746 = vpop.f32.mrb[0].mxu0
        %v2747 = vadd.f32 %v2570, %v2746
        %v2748 = vpop.f32.mrb[0].mxu0
        %v2749 = vpop.f32.mrb[0].mxu0
        %v2750 = vadd.f32 %v2570, %v2749
        %v2751 = vpop.f32.mrb[0].mxu0
        %2752 = vmatprep.mubr.bf16.mxu0 0
        %2753 = vmatmul.mubr.bf16.gmra.mrb[0].mxu0 %v2618
        %v2754 = vpop.f32.mrb[0].mxu0
        %v2755 = vadd.f32 %v2570, %v2754
        %v2756 = vpop.f32.mrb[0].mxu0
        %v2757 = vpop.f32.mrb[0].mxu0
        %v2758 = vadd.f32 %v2570, %v2757
        %v2759 = vpop.f32.mrb[0].mxu0
        %2760 = vmatprep.mubr.bf16.mxu0 0
        %2761 = vmatmul.mubr.bf16.gmra.mrb[0].mxu0 %v2621
        %v2762 = vpop.f32.mrb[0].mxu0
        %v2763 = vadd.f32 %v2570, %v2762
        %v2764 = vpop.f32.mrb[0].mxu0
        %v2765 = vpop.f32.mrb[0].mxu0
        %v2766 = vadd.f32 %v2570, %v2765
        %v2767 = vpop.f32.mrb[0].mxu0
        %2768 = vmatprep.mubr.bf16.mxu0 0
        %2769 = vmatmul.mubr.bf16.gmra.mrb[0].mxu0 %v2624
        %v2770 = vpop.f32.mrb[0].mxu0
        %v2771 = vadd.f32 %v2570, %v2770
        %v2772 = vpop.f32.mrb[0].mxu0
        %v2773 = vpop.f32.mrb[0].mxu0
        %v2774 = vadd.f32 %v2570, %v2773
        %v2775 = vpop.f32.mrb[0].mxu0
        %2776 = vmatprep.mubr.bf16.mxu0 0
        %2777 = vmatmul.mubr.bf16.gmra.mrb[0].mxu0 %v2627
        %v2778 = vpop.f32.mrb[0].mxu0
        %v2779 = vadd.f32 %v2570, %v2778
        %v2780 = vpop.f32.mrb[0].mxu0
        %v2781 = vpop.f32.mrb[0].mxu0
        %v2782 = vadd.f32 %v2570, %v2781
        %v2783 = vpop.f32.mrb[0].mxu0
        %2784 = vmatprep.mubr.bf16.mxu0 0
        %2785 = vmatmul.mubr.bf16.gmra.mrb[0].mxu0 %v2630
        %v2786 = vpop.f32.mrb[0].mxu0
        %v2787 = vadd.f32 %v2570, %v2786
        %v2788 = vpop.f32.mrb[0].mxu0
        %v2789 = vpop.f32.mrb[0].mxu0
        %v2790 = vadd.f32 %v2570, %v2789
        %v2791 = vpop.f32.mrb[0].mxu0
        %2792 = vdwg.mxu0
        %v2793 = vadd.f32 %v2667, %v2670
        %v2794 = vadd.f32 %v2793, %v2675
        %v2795 = vadd.f32 %v2794, %v2678
        %v2796 = vadd.f32 %v2795, %v2683
        %v2797 = vadd.f32 %v2796, %v2686
        %v2798 = vadd.f32 %v2797, %v2691
        %v2799 = vadd.f32 %v2798, %v2694
        %v2800 = vadd.f32 %v2799, %v2699
        %v2801 = vadd.f32 %v2800, %v2702
        %v2802 = vadd.f32 %v2801, %v2707
        %v2803 = vadd.f32 %v2802, %v2710
        %v2804 = vadd.f32 %v2803, %v2715
        %v2805 = vadd.f32 %v2804, %v2718
        %v2806 = vadd.f32 %v2805, %v2723
        %v2807 = vadd.f32 %v2806, %v2726
        %v2808 = vadd.f32 %v2807, %v2731
        %v2809 = vadd.f32 %v2808, %v2734
        %v2810 = vadd.f32 %v2809, %v2739
        %v2811 = vadd.f32 %v2810, %v2742
        %v2812 = vadd.f32 %v2811, %v2747
        %v2813 = vadd.f32 %v2812, %v2750
        %v2814 = vadd.f32 %v2813, %v2755
        %v2815 = vadd.f32 %v2814, %v2758
        %v2816 = vadd.f32 %v2815, %v2763
        %v2817 = vadd.f32 %v2816, %v2766
        %v2818 = vadd.f32 %v2817, %v2771
        %v2819 = vadd.f32 %v2818, %v2774
        %v2820 = vadd.f32 %v2819, %v2779
        %v2821 = vadd.f32 %v2820, %v2782
        %v2822 = vadd.f32 %v2821, %v2787
        %v2823 = vadd.f32 %v2822, %v2790
        %v2824 = vrot.slane %v2823, 4
        %v2825 = vadd.f32 %v2823, %v2824
        %v2826 = vrot.slane %v2825, 2
        %v2827 = vadd.f32 %v2825, %v2826
        %v2828 = vrot.slane %v2827, 1
        %v2829 = vadd.f32 %v2827, %v2828
        %v2830 = vrcp.pop 256.0
        %v2831 = vmul.f32 %v2829, %v2830
        %v2832 = vld [vmem:[%s7] sm:$0xff]
        %v2833 = vmul.f32 %v2831, %v2832
        %2834 = vadd.xlane.f32.xlu0 %v2833
        %v2835 = vpop.xlane.xlu0 %2834
        %v2836 = vld [vmem:[%s8] sm:$0x1]
        %v2838 = vlaneseq
        %v2839 = vshrl.u32 %v2838, 7
        %v2840 = vsub.s32 0, %v2839
        %v2841 = vrot.slane %v2836, %v2840
        %2843 = vbcast.lane.b32.xlu0 %v2841, 256
        %v2844 = vpop.permute.xlu0 %2843
        %v2846 = vadd.f32 %v2835, %v2844
        %v2847 = vmax.f32 %v2846, 0.0
        %v2848 = vld [vmem:[%s9] sm:$0xff]
        %2850 = vset.pattern.permute.xlu0 0
        %2851 = vperm.xlu0 %2850, %v2847
        %v2852 = vpop.permute.xlu0 %2851
        %v2854 = vmul.f32 %v2852, %v2848
        %v2855 = vrot.slane %v2854, 4
        %v2856 = vadd.f32 %v2854, %v2855
        %v2857 = vrot.slane %v2856, 2
        %v2858 = vadd.f32 %v2856, %v2857
        %v2859 = vrot.slane %v2858, 1
        %v2860 = vadd.f32 %v2858, %v2859
        %v2861 = vld [vmem:[%s10] sm:$0x1]
        %v2862 = vadd.f32 %v2860, %v2861
        %v2863 = vxor.u32 %v2862, 2147483648
        %v2864 = vmul.f32 %v2863, 1.442695
        %v2865 = vpow.pop %v2864
        %v2866 = vadd.f32 %v2865, 1.0
        %v2867 = vrcp.pop %v2866
        %v2868 = vmul.f32 1.0, %v2867
        %v2869 = vlaneseq
        %v2870 = vshrl.u32 %v2869, 7
        %v2871 = vsub.s32 0, %v2870
        %v2872 = vrot.slane %v2868, %v2871
        %v2873 = vmul.f32 %v2667, %v2872
        %v2874 = vmul.f32 %v2670, %v2872
        %v2875 = vmul.f32 %v2675, %v2872
        %v2876 = vmul.f32 %v2678, %v2872
        %v2877 = vmul.f32 %v2683, %v2872
        %v2878 = vmul.f32 %v2686, %v2872
        %v2879 = vmul.f32 %v2691, %v2872
        %v2880 = vmul.f32 %v2694, %v2872
        %v2881 = vmul.f32 %v2699, %v2872
        %v2882 = vmul.f32 %v2702, %v2872
        %v2883 = vmul.f32 %v2707, %v2872
        %v2884 = vmul.f32 %v2710, %v2872
        %v2885 = vmul.f32 %v2715, %v2872
        %v2886 = vmul.f32 %v2718, %v2872
        %v2887 = vmul.f32 %v2723, %v2872
        %v2888 = vmul.f32 %v2726, %v2872
        %v2889 = vmul.f32 %v2731, %v2872
        %v2890 = vmul.f32 %v2734, %v2872
        %v2891 = vmul.f32 %v2739, %v2872
        %v2892 = vmul.f32 %v2742, %v2872
        %v2893 = vmul.f32 %v2747, %v2872
        %v2894 = vmul.f32 %v2750, %v2872
        %v2895 = vmul.f32 %v2755, %v2872
        %v2896 = vmul.f32 %v2758, %v2872
        %v2897 = vmul.f32 %v2763, %v2872
        %v2898 = vmul.f32 %v2766, %v2872
        %v2899 = vmul.f32 %v2771, %v2872
        %v2900 = vmul.f32 %v2774, %v2872
        %v2901 = vmul.f32 %v2779, %v2872
        %v2902 = vmul.f32 %v2782, %v2872
        %v2903 = vmul.f32 %v2787, %v2872
        %v2904 = vmul.f32 %v2790, %v2872
        %v2905 = vadd.f32 %v2873, %v424
        %v2906 = vadd.f32 %v2874, %v425
        %v2907 = vadd.f32 %v2875, %v426
        %v2908 = vadd.f32 %v2876, %v427
        %v2909 = vadd.f32 %v2877, %v428
        %v2910 = vadd.f32 %v2878, %v429
        %v2911 = vadd.f32 %v2879, %v430
        %v2912 = vadd.f32 %v2880, %v431
        %v2913 = vadd.f32 %v2881, %v432
        %v2914 = vadd.f32 %v2882, %v433
        %v2915 = vadd.f32 %v2883, %v434
        %v2916 = vadd.f32 %v2884, %v435
        %v2917 = vadd.f32 %v2885, %v436
        %v2918 = vadd.f32 %v2886, %v437
        %v2919 = vadd.f32 %v2887, %v438
        %v2920 = vadd.f32 %v2888, %v439
        %v2921 = vadd.f32 %v2889, %v440
        %v2922 = vadd.f32 %v2890, %v441
        %v2923 = vadd.f32 %v2891, %v442
        %v2924 = vadd.f32 %v2892, %v443
        %v2925 = vadd.f32 %v2893, %v444
        %v2926 = vadd.f32 %v2894, %v445
        %v2927 = vadd.f32 %v2895, %v446
        %v2928 = vadd.f32 %v2896, %v447
        %v2929 = vadd.f32 %v2897, %v448
        %v2930 = vadd.f32 %v2898, %v449
        %v2931 = vadd.f32 %v2899, %v450
        %v2932 = vadd.f32 %v2900, %v451
        %v2933 = vadd.f32 %v2901, %v452
        %v2934 = vadd.f32 %v2902, %v453
        %v2935 = vadd.f32 %v2903, %v454
        %v2936 = vadd.f32 %v2904, %v455
        %2937 = vst [vmem:[%s410] sm:$0xff] %v2905
        %2938 = vst [vmem:[%s410 + $0x8] sm:$0xff] %v2906
        %2939 = vst [vmem:[%s410 + $0x10] sm:$0xff] %v2907
        %2940 = vst [vmem:[%s410 + $0x18] sm:$0xff] %v2908
        %2941 = vst [vmem:[%s410 + $0x20] sm:$0xff] %v2909
        %2942 = vst [vmem:[%s410 + $0x28] sm:$0xff] %v2910
        %2943 = vst [vmem:[%s410 + $0x30] sm:$0xff] %v2911
        %2944 = vst [vmem:[%s410 + $0x38] sm:$0xff] %v2912
        %2945 = vst [vmem:[%s410 + $0x40] sm:$0xff] %v2913
        %2946 = vst [vmem:[%s410 + $0x48] sm:$0xff] %v2914
        %2947 = vst [vmem:[%s410 + $0x50] sm:$0xff] %v2915
        %2948 = vst [vmem:[%s410 + $0x58] sm:$0xff] %v2916
        %2949 = vst [vmem:[%s410 + $0x60] sm:$0xff] %v2917
        %2950 = vst [vmem:[%s410 + $0x68] sm:$0xff] %v2918
        %2951 = vst [vmem:[%s410 + $0x70] sm:$0xff] %v2919
        %2952 = vst [vmem:[%s410 + $0x78] sm:$0xff] %v2920
        %2953 = vst [vmem:[%s410 + $0x80] sm:$0xff] %v2921
        %2954 = vst [vmem:[%s410 + $0x88] sm:$0xff] %v2922
        %2955 = vst [vmem:[%s410 + $0x90] sm:$0xff] %v2923
        %2956 = vst [vmem:[%s410 + $0x98] sm:$0xff] %v2924
        %2957 = vst [vmem:[%s410 + $0xa0] sm:$0xff] %v2925
        %2958 = vst [vmem:[%s410 + $0xa8] sm:$0xff] %v2926
        %2959 = vst [vmem:[%s410 + $0xb0] sm:$0xff] %v2927
        %2960 = vst [vmem:[%s410 + $0xb8] sm:$0xff] %v2928
        %2961 = vst [vmem:[%s410 + $0xc0] sm:$0xff] %v2929
        %2962 = vst [vmem:[%s410 + $0xc8] sm:$0xff] %v2930
        %2963 = vst [vmem:[%s410 + $0xd0] sm:$0xff] %v2931
        %2964 = vst [vmem:[%s410 + $0xd8] sm:$0xff] %v2932
        %2965 = vst [vmem:[%s410 + $0xe0] sm:$0xff] %v2933
        %2966 = vst [vmem:[%s410 + $0xe8] sm:$0xff] %v2934
        %2967 = vst [vmem:[%s410 + $0xf0] sm:$0xff] %v2935
        %2968 = vst [vmem:[%s410 + $0xf8] sm:$0xff] %v2936
        %v2969 = vmax.f32 %v2905, 0.0
        %v2970 = vmax.f32 %v2906, 0.0
        %v2971 = vmax.f32 %v2907, 0.0
        %v2972 = vmax.f32 %v2908, 0.0
        %v2973 = vmax.f32 %v2909, 0.0
        %v2974 = vmax.f32 %v2910, 0.0
        %v2975 = vmax.f32 %v2911, 0.0
        %v2976 = vmax.f32 %v2912, 0.0
        %v2977 = vmax.f32 %v2913, 0.0
        %v2978 = vmax.f32 %v2914, 0.0
        %v2979 = vmax.f32 %v2915, 0.0
        %v2980 = vmax.f32 %v2916, 0.0
        %v2981 = vmax.f32 %v2917, 0.0
        %v2982 = vmax.f32 %v2918, 0.0
        %v2983 = vmax.f32 %v2919, 0.0
        %v2984 = vmax.f32 %v2920, 0.0
        %v2985 = vmax.f32 %v2921, 0.0
        %v2986 = vmax.f32 %v2922, 0.0
        %v2987 = vmax.f32 %v2923, 0.0
        %v2988 = vmax.f32 %v2924, 0.0
        %v2989 = vmax.f32 %v2925, 0.0
        %v2990 = vmax.f32 %v2926, 0.0
        %v2991 = vmax.f32 %v2927, 0.0
        %v2992 = vmax.f32 %v2928, 0.0
        %v2993 = vmax.f32 %v2929, 0.0
        %v2994 = vmax.f32 %v2930, 0.0
        %v2995 = vmax.f32 %v2931, 0.0
        %v2996 = vmax.f32 %v2932, 0.0
        %v2997 = vmax.f32 %v2933, 0.0
        %v2998 = vmax.f32 %v2934, 0.0
        %v2999 = vmax.f32 %v2935, 0.0
        %v3000 = vmax.f32 %v2936, 0.0
        %3001 = vst [vmem:[%s417] sm:$0xff] %v2969
        %3002 = vst [vmem:[%s417 + $0x8] sm:$0xff] %v2970
        %3003 = vst [vmem:[%s417 + $0x10] sm:$0xff] %v2971
        %3004 = vst [vmem:[%s417 + $0x18] sm:$0xff] %v2972
        %3005 = vst [vmem:[%s417 + $0x20] sm:$0xff] %v2973
        %3006 = vst [vmem:[%s417 + $0x28] sm:$0xff] %v2974
        %3007 = vst [vmem:[%s417 + $0x30] sm:$0xff] %v2975
        %3008 = vst [vmem:[%s417 + $0x38] sm:$0xff] %v2976
        %3009 = vst [vmem:[%s417 + $0x40] sm:$0xff] %v2977
        %3010 = vst [vmem:[%s417 + $0x48] sm:$0xff] %v2978
        %3011 = vst [vmem:[%s417 + $0x50] sm:$0xff] %v2979
        %3012 = vst [vmem:[%s417 + $0x58] sm:$0xff] %v2980
        %3013 = vst [vmem:[%s417 + $0x60] sm:$0xff] %v2981
        %3014 = vst [vmem:[%s417 + $0x68] sm:$0xff] %v2982
        %3015 = vst [vmem:[%s417 + $0x70] sm:$0xff] %v2983
        %3016 = vst [vmem:[%s417 + $0x78] sm:$0xff] %v2984
        %3017 = vst [vmem:[%s417 + $0x80] sm:$0xff] %v2985
        %3018 = vst [vmem:[%s417 + $0x88] sm:$0xff] %v2986
        %3019 = vst [vmem:[%s417 + $0x90] sm:$0xff] %v2987
        %3020 = vst [vmem:[%s417 + $0x98] sm:$0xff] %v2988
        %3021 = vst [vmem:[%s417 + $0xa0] sm:$0xff] %v2989
        %3022 = vst [vmem:[%s417 + $0xa8] sm:$0xff] %v2990
        %3023 = vst [vmem:[%s417 + $0xb0] sm:$0xff] %v2991
        %3024 = vst [vmem:[%s417 + $0xb8] sm:$0xff] %v2992
        %3025 = vst [vmem:[%s417 + $0xc0] sm:$0xff] %v2993
        %3026 = vst [vmem:[%s417 + $0xc8] sm:$0xff] %v2994
        %3027 = vst [vmem:[%s417 + $0xd0] sm:$0xff] %v2995
        %3028 = vst [vmem:[%s417 + $0xd8] sm:$0xff] %v2996
        %3029 = vst [vmem:[%s417 + $0xe0] sm:$0xff] %v2997
        %3030 = vst [vmem:[%s417 + $0xe8] sm:$0xff] %v2998
        %3031 = vst [vmem:[%s417 + $0xf0] sm:$0xff] %v2999
        %3032 = vst [vmem:[%s417 + $0xf8] sm:$0xff] %v3000
        %s3033 = sand.u32 %s274, 1
        %s3034 = scalar_lea.sflag [#allocation3], %s3033
        %s3035 = sand.u32 %s274, 1
        %s3036 = smul.addr %s3035, 256
        %s3037 = scalar_lea.vmem [#allocation2], %s3036
        %s3038 = sand.u32 %s300, 1
        %s3039 = scalar_lea.sflag [#allocation5], %s3038
        %s3040 = sand.u32 %s300, 1
        %s3041 = smul.addr %s3040, 256
        %s3042 = scalar_lea.vmem [#allocation4], %s3041
        // Predicated region
        $region65: #{bottleneck_pallas.1} parent=63 // pred_check
          %p3043 = pneg %p284
        $region66: #{bottleneck_pallas.1} parent=63 // pred_check_branch
          %3045 = sbr.rel (%p3043) target = $region68
        $region67: #{bottleneck_pallas.1} parent=63 // pred_region
          %s3047 = ssub.s32 4096, 4096
          %3048 = vsyncadd %s3034, %s3047
          %s3049 = smul.addr %s30, 32
          %s3050 = smul.addr %s3049, 128
          %s3051 = scalar_lea.hbm %s11, %s3050
          %s3052 = sshll.u32 %s3037, 4
          %s3053 = int_to_ptr.vmem [resolvable:$true] %s3052
          %3058 = dma.vmem_to_hbm [thread:$0]  %s3053, 4096, %s3051, %s3034, 128, 128, 8
        $region68: #{bottleneck_pallas.1} parent=63 // pred_fallthru
          _
        // Predicated region
        $region69: #{bottleneck_pallas.1} parent=63 // pred_check
          %p3059 = pneg %p310
        $region70: #{bottleneck_pallas.1} parent=63 // pred_check_branch
          %3061 = sbr.rel (%p3059) target = $region72
        $region71: #{bottleneck_pallas.1} parent=63 // pred_region
          %s3063 = ssub.s32 4096, 4096
          %3064 = vsyncadd %s3039, %s3063
          %s3065 = smul.addr %s30, 32
          %s3066 = smul.addr %s3065, 128
          %s3067 = scalar_lea.hbm %s12, %s3066
          %s3068 = sshll.u32 %s3042, 4
          %s3069 = int_to_ptr.vmem [resolvable:$true] %s3068
          %3074 = dma.vmem_to_hbm [thread:$0]  %s3069, 4096, %s3067, %s3039, 128, 128, 8
        $region72: #{bottleneck_pallas.1} parent=63 // pred_fallthru
          _
      $region64: #{bottleneck_pallas.1} parent=5 // pred_fallthru
        _
      %p3075 = scmp.le.s32.totalorder 2, %s25
      // Predicated region
      $region73: #{bottleneck_pallas.1} parent=5 // pred_check
        %p3076 = pneg %p3075
      $region74: #{bottleneck_pallas.1} parent=5 // pred_check_branch
        %3078 = sbr.rel (%p3076) target = $region76
      $region75: #{bottleneck_pallas.1} parent=5 // pred_region
        %s3079 = ssub.s32 %s25, 2
        // Predicated region
        $region77: #{bottleneck_pallas.1} parent=75 // pred_check
          %p3080 = pneg %p290
        $region78: #{bottleneck_pallas.1} parent=75 // pred_check_branch
          %3082 = sbr.rel (%p3080) target = $region80
        $region79: #{bottleneck_pallas.1} parent=75 // pred_region
          %s3083 = sand.u32 %s275, 1
          %s3084 = scalar_lea.sflag [#allocation3], %s3083
          %s3085 = sand.u32 %s275, 1
          %s3086 = smul.addr %s3085, 256
          %s3087 = scalar_lea.vmem [#allocation2], %s3086
          %3088 = dma.done %s3084, 4096
        $region80: #{bottleneck_pallas.1} parent=75 // pred_fallthru
          _
        // Predicated region
        $region81: #{bottleneck_pallas.1} parent=75 // pred_check
          %p3089 = pneg %p316
        $region82: #{bottleneck_pallas.1} parent=75 // pred_check_branch
          %3091 = sbr.rel (%p3089) target = $region84
        $region83: #{bottleneck_pallas.1} parent=75 // pred_region
          %s3092 = sand.u32 %s301, 1
          %s3093 = scalar_lea.sflag [#allocation5], %s3092
          %s3094 = sand.u32 %s301, 1
          %s3095 = smul.addr %s3094, 256
          %s3096 = scalar_lea.vmem [#allocation4], %s3095
          %3097 = dma.done %s3093, 4096
        $region84: #{bottleneck_pallas.1} parent=75 // pred_fallthru
          _
      $region76: #{bottleneck_pallas.1} parent=5 // pred_fallthru
        _
    $region6: #{bottleneck_pallas.1} parent=1 // loop_footer
      %s29 = sadd.s32 1, %s25
    $region7: #{bottleneck_pallas.1} parent=1 // loop_footer_branch
      %24 = sbr.rel target = $region3
    $region8: #{bottleneck_pallas.1} parent=1 // loop_exit
      _
    %3098 = vsyncpa [#allocation3], 1
    %s3099 = scalar_lea.sflag [#allocation3], 1
    %3100 = vsyncpa %s3099, 1
    %3101 = vsyncpa [#allocation5], 1
    %s3102 = scalar_lea.sflag [#allocation5], 1
    %3103 = vsyncpa %s3102, 1

</llo_original>
